<compile_context>
chip_gen: v6e
topology: v6e:2x2x1
jax: 0.10.0
libtpu: 0.0.40
codegen_flags: <defaults>
</compile_context>

<pallas_src>
import math
import jax
import jax.numpy as jnp
from jax.experimental import pallas as pl
from jax.experimental.pallas import tpu as pltpu


def _bottleneck_kernel(x_ref, w1_ref, w2_ref, w3_ref, b1_ref, b2_ref, b3_ref,
                       o_ref, pad_ref):
    # x_ref : (1, H, W, Cin)  full image (revisited across row tiles)
    # o_ref : (1, TH, W, Cout) current row tile of the output
    # pad_ref: (TH+2, W+2, P) f32 scratch holding zero-padded h1 for the 3x3 conv
    H, W, Cin = x_ref.shape[1], x_ref.shape[2], x_ref.shape[3]
    TH = o_ref.shape[1]
    P = w1_ref.shape[1]
    Cout = o_ref.shape[3]

    t = pl.program_id(1)
    n_t = pl.num_programs(1)
    row0 = t * TH

    # ---- gather TH + 2 input rows: the tile plus a 1-row halo (clamped at edges) ----
    x_c = x_ref[0, pl.ds(row0, TH)]                                    # (TH, W, Cin)
    x_t = x_ref[0, pl.ds(jnp.maximum(row0 - 1, 0), 1)]                 # (1, W, Cin)
    x_b = x_ref[0, pl.ds(jnp.minimum(row0 + TH, H - 1), 1)]            # (1, W, Cin)
    x_halo = jnp.concatenate([x_t, x_c, x_b], axis=0)                  # (TH+2, W, Cin)

    # ---- conv1 (1x1, BN1 scale folded into weight), bf16 MXU / f32 accumulate ----
    h1 = jnp.dot(x_halo.reshape((TH + 2) * W, Cin).astype(jnp.bfloat16),
                 w1_ref[...], preferred_element_type=jnp.float32)
    h1 = jnp.maximum(h1 + b1_ref[...], 0.0)                            # ((TH+2)*W, P)

    # ---- write zero-padded h1 into scratch (fully rewritten every step) ----
    pad_ref[:, 1:W + 1, :] = h1.reshape(TH + 2, W, P)
    zcol = jnp.zeros((TH + 2, 1, P), pad_ref.dtype)
    pad_ref[:, 0:1, :] = zcol
    pad_ref[:, W + 1:W + 2, :] = zcol

    # halo rows that fall outside the image are conv2's zero padding, not real data
    zrow = jnp.zeros((1, W + 2, P), pad_ref.dtype)

    @pl.when(t == 0)
    def _():
        pad_ref[0:1, :, :] = zrow

    @pl.when(t == n_t - 1)
    def _():
        pad_ref[TH + 1:TH + 2, :, :] = zrow

    # ---- conv2 (3x3, pad=1) as a single im2col matmul with K = 9P (BN2 folded) ----
    cols = []
    for dh in range(3):
        for dw in range(3):
            cols.append(pad_ref[dh:dh + TH, dw:dw + W, :])             # (TH, W, P)
    patch = jnp.concatenate(cols, axis=-1)                             # (TH, W, 9P)
    patch = patch.reshape(TH * W, 9 * P).astype(jnp.bfloat16)
    h2 = jnp.dot(patch, w2_ref[...], preferred_element_type=jnp.float32)
    h2 = jnp.maximum(h2 + b2_ref[...], 0.0)                            # (TH*W, P)

    # ---- conv3 (1x1, BN3 scale folded) + bias ----
    h3 = jnp.dot(h2.astype(jnp.bfloat16), w3_ref[...],
                 preferred_element_type=jnp.float32)
    h3 = h3 + b3_ref[...]                                              # (TH*W, Cout)

    # ---- identity residual (downsample is None) + ReLU, f32 elementwise ----
    res = x_c.reshape(TH * W, Cin).astype(jnp.float32)
    out = jnp.maximum(h3 + res, 0.0)
    o_ref[0] = out.reshape(TH, W, Cout).astype(o_ref.dtype)


def bottleneck_cc3_forward(x, params, *, row_tile=8, data_format="NCHW"):
    (w1, w2, w3, a1, b1, a2, b2, a3, b3) = params

    if data_format == "NCHW":
        x_nhwc = jnp.transpose(x, (0, 2, 3, 1))                        # NCHW -> NHWC
    else:
        x_nhwc = x
    N, H, W, Cin = x_nhwc.shape
    P = w1.shape[1]
    Cout = 4 * P
    assert Cin == Cout, "downsample=None requires inplanes == 4*planes"

    # Fold eval-mode BN scales into the conv weights (per output channel); bf16 weights.
    w1s = (w1 * a1.reshape(1, P)).astype(jnp.bfloat16)                 # (Cin, P)
    w2s = (w2 * a2.reshape(1, 1, 1, P)).reshape(9 * P, P).astype(jnp.bfloat16)
    w3s = (w3 * a3.reshape(1, Cout)).astype(jnp.bfloat16)              # (P, Cout)
    b1f = b1.reshape(1, P).astype(jnp.float32)
    b2f = b2.reshape(1, P).astype(jnp.float32)
    b3f = b3.reshape(1, Cout).astype(jnp.float32)

    # Row tile: bounds the per-step working set (for real ResNet shapes); must divide H.
    TH = max(1, min(row_tile, H))
    while H % TH:
        TH -= 1
    n_t = H // TH

    flops = 2 * N * H * W * (Cin * P + 9 * P * P + P * Cout)
    bytes_accessed = int(2 * x_nhwc.size * x_nhwc.dtype.itemsize
                         + 2 * (w1s.size + w2s.size + w3s.size)
                         + 4 * (b1f.size + b2f.size + b3f.size))
    cost = pl.CostEstimate(flops=int(flops), transcendentals=0,
                           bytes_accessed=bytes_accessed)

    def full_spec(arr):
        nd = arr.ndim
        return pl.BlockSpec(arr.shape, lambda n, t, _nd=nd: (0,) * _nd)

    out_nhwc = pl.pallas_call(
        _bottleneck_kernel,
        out_shape=jax.ShapeDtypeStruct((N, H, W, Cout), x_nhwc.dtype),
        grid_spec=pltpu.PrefetchScalarGridSpec(
            num_scalar_prefetch=0,
            grid=(N, n_t),
            in_specs=[
                # whole image per n (re-DMA elided across row tiles of the same image)
                pl.BlockSpec((1, H, W, Cin), lambda n, t: (n, 0, 0, 0)),
                full_spec(w1s), full_spec(w2s), full_spec(w3s),
                full_spec(b1f), full_spec(b2f), full_spec(b3f),
            ],
            out_specs=pl.BlockSpec((1, TH, W, Cout), lambda n, t: (n, t, 0, 0)),
            scratch_shapes=[pltpu.VMEM((TH + 2, W + 2, P), jnp.float32)],
        ),
        compiler_params=pltpu.CompilerParams(
            dimension_semantics=("parallel", "parallel"),
            # explicit scoped-VMEM budget; kept under v7x's 64 MiB physical per-TC
            vmem_limit_bytes=48 * 1024 * 1024),
        cost_estimate=cost,
    )(x_nhwc, w1s, w2s, w3s, b1f, b2f, b3f)

    if data_format == "NCHW":
        return jnp.transpose(out_nhwc, (0, 3, 1, 2))                   # NHWC -> NCHW
    return out_nhwc


def init_params(key, inplanes, planes, expansion=4, eps=1e-5):
    ks = jax.random.split(key, 16)
    # conv weights: torch OIHW -> stored here as (Cin, Cout) / HWIO
    w1 = jax.random.normal(ks[0], (inplanes, planes), jnp.float32) / math.sqrt(inplanes)
    w2 = jax.random.normal(ks[1], (3, 3, planes, planes), jnp.float32) / math.sqrt(9 * planes)
    w3 = jax.random.normal(ks[2], (planes, planes * expansion), jnp.float32) / math.sqrt(planes)

    def folded_bn(kg, kb, km, kv, c):
        gamma = 1.0 + 0.1 * jax.random.normal(kg, (c,), jnp.float32)
        beta = 0.1 * jax.random.normal(kb, (c,), jnp.float32)
        mean = 0.1 * jax.random.normal(km, (c,), jnp.float32)
        var = jax.random.uniform(kv, (c,), jnp.float32, minval=0.5, maxval=1.5)
        a = gamma * jax.lax.rsqrt(var + eps)
        b = beta - mean * a
        return a.reshape(1, c), b.reshape(1, c)

    a1, b1 = folded_bn(ks[3], ks[4], ks[5], ks[6], planes)
    a2, b2 = folded_bn(ks[7], ks[8], ks[9], ks[10], planes)
    a3, b3 = folded_bn(ks[11], ks[12], ks[13], ks[14], planes * expansion)
    return (w1, w2, w3, a1, b1, a2, b2, a3, b3)


def reference_forward(x_nchw, params):
    # Pure-JAX f32 reference (uses lax.conv for the 3x3) to validate the kernel.
    (w1, w2, w3, a1, b1, a2, b2, a3, b3) = params
    x = jnp.transpose(x_nchw, (0, 2, 3, 1))
    h1 = jnp.einsum('nhwc,co->nhwo', x, w1)
    h1 = jnp.maximum(h1 * a1[0] + b1[0], 0.0)
    h2 = jax.lax.conv_general_dilated(
        h1, w2, window_strides=(1, 1), padding=((1, 1), (1, 1)),
        dimension_numbers=('NHWC', 'HWIO', 'NHWC'))
    h2 = jnp.maximum(h2 * a2[0] + b2[0], 0.0)
    h3 = jnp.einsum('nhwc,co->nhwo', h2, w3)
    h3 = h3 * a3[0] + b3[0]
    out = jnp.maximum(h3 + x, 0.0)
    return jnp.transpose(out, (0, 3, 1, 2))


if __name__ == "__main__":
    key = jax.random.PRNGKey(0)
    kx, kp = jax.random.split(key)

    planes = 8
    inplanes = planes * 4          # identity shortcut: inplanes == planes * expansion
    N, H, W = 2, 16, 16

    x = jax.random.normal(kx, (N, inplanes, H, W), jnp.float32)   # NCHW, like PyTorch
    params = init_params(kp, inplanes, planes)

    out = bottleneck_cc3_forward(x, params, row_tile=8)           # 2 row tiles: tests seams
    out = jax.block_until_ready(out)
    assert out.shape == (N, inplanes, H, W)

    ref = reference_forward(x, params)
    max_err = float(jnp.max(jnp.abs(out - ref)))
    # bf16 matmul operands vs f32 reference -> loose-but-bug-catching tolerance
    if not jnp.allclose(out, ref, rtol=5e-2, atol=5e-2):
        raise AssertionError(f"kernel/reference mismatch, max abs err = {max_err}")

    print("KERNEL_OK")
</pallas_src>

<mosaic_0001>
module attributes {stable_mosaic.version = 11 : i64} {
  func.func @_bottleneck_kernel(%arg0: i32, %arg1: i32, %arg2: memref<1x16x16x32xf32, #tpu.memory_space<vmem>>, %arg3: memref<32x8xbf16, #tpu.memory_space<vmem>>, %arg4: memref<72x8xbf16, #tpu.memory_space<vmem>>, %arg5: memref<8x32xbf16, #tpu.memory_space<vmem>>, %arg6: memref<1x8xf32, #tpu.memory_space<vmem>>, %arg7: memref<1x8xf32, #tpu.memory_space<vmem>>, %arg8: memref<1x32xf32, #tpu.memory_space<vmem>>, %arg9: memref<1x8x16x32xf32, #tpu.memory_space<vmem>>, %arg10: memref<10x18x8xf32, #tpu.memory_space<vmem>>) attributes {dimension_semantics = [#tpu.dimension_semantics<parallel>, #tpu.dimension_semantics<parallel>], iteration_bounds = array<i64: 2, 2>, scalar_prefetch = 0 : i64, scratch_operands = 1 : i64, tpu.core_type = #tpu.core_type<tc>, window_params = [{transform_indices = @transform_0, window_bounds = array<i64: 1, 16, 16, 32>}, {pipeline_mode = #tpu.pipeline_mode<synchronous>, transform_indices = @transform_1, window_bounds = array<i64: 32, 8>}, {pipeline_mode = #tpu.pipeline_mode<synchronous>, transform_indices = @transform_2, window_bounds = array<i64: 72, 8>}, {pipeline_mode = #tpu.pipeline_mode<synchronous>, transform_indices = @transform_3, window_bounds = array<i64: 8, 32>}, {pipeline_mode = #tpu.pipeline_mode<synchronous>, transform_indices = @transform_4, window_bounds = array<i64: 1, 8>}, {pipeline_mode = #tpu.pipeline_mode<synchronous>, transform_indices = @transform_5, window_bounds = array<i64: 1, 8>}, {pipeline_mode = #tpu.pipeline_mode<synchronous>, transform_indices = @transform_6, window_bounds = array<i64: 1, 32>}, {transform_indices = @transform_7, window_bounds = array<i64: 1, 8, 16, 32>}]} {
    %c8_i32 = arith.constant 8 : i32
    %0 = arith.muli %arg1, %c8_i32 : i32
    %c0 = arith.constant 0 : index
    %1 = arith.index_cast %0 : i32 to index
    %c0_0 = arith.constant 0 : index
    %c0_1 = arith.constant 0 : index
    %2 = vector.load %arg2[%c0, %1, %c0_0, %c0_1] : memref<1x16x16x32xf32, #tpu.memory_space<vmem>>, vector<1x8x16x32xf32>
    %3 = vector.shape_cast %2 : vector<1x8x16x32xf32> to vector<8x16x32xf32>
    %c1_i32 = arith.constant 1 : i32
    %4 = arith.subi %0, %c1_i32 : i32
    %c0_i32 = arith.constant 0 : i32
    %5 = arith.maxsi %4, %c0_i32 : i32
    %c0_2 = arith.constant 0 : index
    %6 = arith.index_cast %5 : i32 to index
    %c0_3 = arith.constant 0 : index
    %c0_4 = arith.constant 0 : index
    %7 = vector.load %arg2[%c0_2, %6, %c0_3, %c0_4] : memref<1x16x16x32xf32, #tpu.memory_space<vmem>>, vector<1x1x16x32xf32>
    %8 = vector.shape_cast %7 : vector<1x1x16x32xf32> to vector<1x16x32xf32>
    %c8_i32_5 = arith.constant 8 : i32
    %9 = arith.addi %0, %c8_i32_5 : i32
    %c15_i32 = arith.constant 15 : i32
    %10 = arith.minsi %9, %c15_i32 : i32
    %c0_6 = arith.constant 0 : index
    %11 = arith.index_cast %10 : i32 to index
    %c0_7 = arith.constant 0 : index
    %c0_8 = arith.constant 0 : index
    %12 = vector.load %arg2[%c0_6, %11, %c0_7, %c0_8] : memref<1x16x16x32xf32, #tpu.memory_space<vmem>>, vector<1x1x16x32xf32>
    %13 = vector.shape_cast %12 : vector<1x1x16x32xf32> to vector<1x16x32xf32>
    %14 = tpu.concatenate %8, %3, %13 in 0 : vector<1x16x32xf32>, vector<8x16x32xf32>, vector<1x16x32xf32> -> vector<10x16x32xf32>
    %15 = vector.shape_cast %14 : vector<10x16x32xf32> to vector<160x32xf32>
    %16 = arith.truncf %15 : vector<160x32xf32> to vector<160x32xbf16>
    %c0_9 = arith.constant 0 : index
    %c0_10 = arith.constant 0 : index
    %17 = vector.load %arg3[%c0_9, %c0_10] : memref<32x8xbf16, #tpu.memory_space<vmem>>, vector<32x8xbf16>
    %cst = arith.constant dense<0.000000e+00> : vector<160x8xf32>
    %18 = tpu.matmul %16, %17, %cst {dimension_numbers = #tpu.dot_dimension_numbers<[1], [0], [0], [1], [0, 0, 1, 1], [], []>} : vector<160x32xbf16>, vector<32x8xbf16>, vector<160x8xf32> -> vector<160x8xf32>
    %c0_11 = arith.constant 0 : index
    %c0_12 = arith.constant 0 : index
    %19 = vector.load %arg6[%c0_11, %c0_12] : memref<1x8xf32, #tpu.memory_space<vmem>>, vector<1x8xf32>
    %20 = vector.broadcast %19 : vector<1x8xf32> to vector<160x8xf32>
    %21 = arith.addf %18, %20 : vector<160x8xf32>
    %cst_13 = arith.constant 0.000000e+00 : f32
    %22 = vector.broadcast %cst_13 : f32 to vector<160x8xf32>
    %23 = arith.maximumf %21, %22 : vector<160x8xf32>
    %24 = vector.shape_cast %23 : vector<160x8xf32> to vector<10x16x8xf32>
    %c0_14 = arith.constant 0 : index
    %c1 = arith.constant 1 : index
    %c0_15 = arith.constant 0 : index
    %25 = vector.load %arg10[%c0_14, %c1, %c0_15] : memref<10x18x8xf32, #tpu.memory_space<vmem>>, vector<10x16x8xf32>
    tpu.vector_store %arg10[%c0_14, %c1, %c0_15], %24 {strides = array<i32>} : memref<10x18x8xf32, #tpu.memory_space<vmem>>, vector<10x16x8xf32>,
    %cst_16 = arith.constant 0.000000e+00 : f32
    %26 = vector.broadcast %cst_16 : f32 to vector<10x1x8xf32>
    %c0_17 = arith.constant 0 : index
    %c0_18 = arith.constant 0 : index
    %c0_19 = arith.constant 0 : index
    %27 = vector.load %arg10[%c0_17, %c0_18, %c0_19] : memref<10x18x8xf32, #tpu.memory_space<vmem>>, vector<10x1x8xf32>
    tpu.vector_store %arg10[%c0_17, %c0_18, %c0_19], %26 {strides = array<i32>} : memref<10x18x8xf32, #tpu.memory_space<vmem>>, vector<10x1x8xf32>,
    %c0_20 = arith.constant 0 : index
    %c17 = arith.constant 17 : index
    %c0_21 = arith.constant 0 : index
    %28 = vector.load %arg10[%c0_20, %c17, %c0_21] : memref<10x18x8xf32, #tpu.memory_space<vmem>>, vector<10x1x8xf32>
    tpu.vector_store %arg10[%c0_20, %c17, %c0_21], %26 {strides = array<i32>} : memref<10x18x8xf32, #tpu.memory_space<vmem>>, vector<10x1x8xf32>,
    %cst_22 = arith.constant 0.000000e+00 : f32
    %29 = vector.broadcast %cst_22 : f32 to vector<1x18x8xf32>
    %c0_i32_23 = arith.constant 0 : i32
    %30 = arith.cmpi eq, %arg1, %c0_i32_23 : i32
    %31 = arith.extui %30 : i1 to i32
    %c0_i32_24 = arith.constant 0 : i32
    %32 = arith.cmpi ne, %31, %c0_i32_24 : i32
    scf.if %32 {
      %c0_69 = arith.constant 0 : index
      %c0_70 = arith.constant 0 : index
      %c0_71 = arith.constant 0 : index
      %69 = vector.load %arg10[%c0_69, %c0_70, %c0_71] : memref<10x18x8xf32, #tpu.memory_space<vmem>>, vector<1x18x8xf32>
      tpu.vector_store %arg10[%c0_69, %c0_70, %c0_71], %29 {strides = array<i32>} : memref<10x18x8xf32, #tpu.memory_space<vmem>>, vector<1x18x8xf32>,
    } else {
    }
    %c1_i32_25 = arith.constant 1 : i32
    %33 = arith.cmpi eq, %arg1, %c1_i32_25 : i32
    %34 = arith.extui %33 : i1 to i32
    %c0_i32_26 = arith.constant 0 : i32
    %35 = arith.cmpi ne, %34, %c0_i32_26 : i32
    scf.if %35 {
      %c9 = arith.constant 9 : index
      %c0_69 = arith.constant 0 : index
      %c0_70 = arith.constant 0 : index
      %69 = vector.load %arg10[%c9, %c0_69, %c0_70] : memref<10x18x8xf32, #tpu.memory_space<vmem>>, vector<1x18x8xf32>
      tpu.vector_store %arg10[%c9, %c0_69, %c0_70], %29 {strides = array<i32>} : memref<10x18x8xf32, #tpu.memory_space<vmem>>, vector<1x18x8xf32>,
    } else {
    }
    %c0_27 = arith.constant 0 : index
    %c0_28 = arith.constant 0 : index
    %c0_29 = arith.constant 0 : index
    %36 = vector.load %arg10[%c0_27, %c0_28, %c0_29] : memref<10x18x8xf32, #tpu.memory_space<vmem>>, vector<8x16x8xf32>
    %c0_30 = arith.constant 0 : index
    %c1_31 = arith.constant 1 : index
    %c0_32 = arith.constant 0 : index
    %37 = vector.load %arg10[%c0_30, %c1_31, %c0_32] : memref<10x18x8xf32, #tpu.memory_space<vmem>>, vector<8x16x8xf32>
    %c0_33 = arith.constant 0 : index
    %c2 = arith.constant 2 : index
    %c0_34 = arith.constant 0 : index
    %38 = vector.load %arg10[%c0_33, %c2, %c0_34] : memref<10x18x8xf32, #tpu.memory_space<vmem>>, vector<8x16x8xf32>
    %c1_35 = arith.constant 1 : index
    %c0_36 = arith.constant 0 : index
    %c0_37 = arith.constant 0 : index
    %39 = vector.load %arg10[%c1_35, %c0_36, %c0_37] : memref<10x18x8xf32, #tpu.memory_space<vmem>>, vector<8x16x8xf32>
    %c1_38 = arith.constant 1 : index
    %c1_39 = arith.constant 1 : index
    %c0_40 = arith.constant 0 : index
    %40 = vector.load %arg10[%c1_38, %c1_39, %c0_40] : memref<10x18x8xf32, #tpu.memory_space<vmem>>, vector<8x16x8xf32>
    %c1_41 = arith.constant 1 : index
    %c2_42 = arith.constant 2 : index
    %c0_43 = arith.constant 0 : index
    %41 = vector.load %arg10[%c1_41, %c2_42, %c0_43] : memref<10x18x8xf32, #tpu.memory_space<vmem>>, vector<8x16x8xf32>
    %c2_44 = arith.constant 2 : index
    %c0_45 = arith.constant 0 : index
    %c0_46 = arith.constant 0 : index
    %42 = vector.load %arg10[%c2_44, %c0_45, %c0_46] : memref<10x18x8xf32, #tpu.memory_space<vmem>>, vector<8x16x8xf32>
    %c2_47 = arith.constant 2 : index
    %c1_48 = arith.constant 1 : index
    %c0_49 = arith.constant 0 : index
    %43 = vector.load %arg10[%c2_47, %c1_48, %c0_49] : memref<10x18x8xf32, #tpu.memory_space<vmem>>, vector<8x16x8xf32>
    %c2_50 = arith.constant 2 : index
    %c2_51 = arith.constant 2 : index
    %c0_52 = arith.constant 0 : index
    %44 = vector.load %arg10[%c2_50, %c2_51, %c0_52] : memref<10x18x8xf32, #tpu.memory_space<vmem>>, vector<8x16x8xf32>
    %45 = tpu.concatenate %36, %37, %38, %39, %40, %41, %42, %43, %44 in 2 : vector<8x16x8xf32>, vector<8x16x8xf32>, vector<8x16x8xf32>, vector<8x16x8xf32>, vector<8x16x8xf32>, vector<8x16x8xf32>, vector<8x16x8xf32>, vector<8x16x8xf32>, vector<8x16x8xf32> -> vector<8x16x72xf32>
    %46 = vector.shape_cast %45 : vector<8x16x72xf32> to vector<128x72xf32>
    %47 = arith.truncf %46 : vector<128x72xf32> to vector<128x72xbf16>
    %c0_53 = arith.constant 0 : index
    %c0_54 = arith.constant 0 : index
    %48 = vector.load %arg4[%c0_53, %c0_54] : memref<72x8xbf16, #tpu.memory_space<vmem>>, vector<72x8xbf16>
    %cst_55 = arith.constant dense<0.000000e+00> : vector<128x8xf32>
    %49 = tpu.matmul %47, %48, %cst_55 {dimension_numbers = #tpu.dot_dimension_numbers<[1], [0], [0], [1], [0, 0, 1, 1], [], []>} : vector<128x72xbf16>, vector<72x8xbf16>, vector<128x8xf32> -> vector<128x8xf32>
    %c0_56 = arith.constant 0 : index
    %c0_57 = arith.constant 0 : index
    %50 = vector.load %arg7[%c0_56, %c0_57] : memref<1x8xf32, #tpu.memory_space<vmem>>, vector<1x8xf32>
    %51 = vector.broadcast %50 : vector<1x8xf32> to vector<128x8xf32>
    %52 = arith.addf %49, %51 : vector<128x8xf32>
    %cst_58 = arith.constant 0.000000e+00 : f32
    %53 = vector.broadcast %cst_58 : f32 to vector<128x8xf32>
    %54 = arith.maximumf %52, %53 : vector<128x8xf32>
    %55 = arith.truncf %54 : vector<128x8xf32> to vector<128x8xbf16>
    %c0_59 = arith.constant 0 : index
    %c0_60 = arith.constant 0 : index
    %56 = vector.load %arg5[%c0_59, %c0_60] : memref<8x32xbf16, #tpu.memory_space<vmem>>, vector<8x32xbf16>
    %cst_61 = arith.constant dense<0.000000e+00> : vector<128x32xf32>
    %57 = tpu.matmul %55, %56, %cst_61 {dimension_numbers = #tpu.dot_dimension_numbers<[1], [0], [0], [1], [0, 0, 1, 1], [], []>} : vector<128x8xbf16>, vector<8x32xbf16>, vector<128x32xf32> -> vector<128x32xf32>
    %c0_62 = arith.constant 0 : index
    %c0_63 = arith.constant 0 : index
    %58 = vector.load %arg8[%c0_62, %c0_63] : memref<1x32xf32, #tpu.memory_space<vmem>>, vector<1x32xf32>
    %59 = vector.broadcast %58 : vector<1x32xf32> to vector<128x32xf32>
    %60 = arith.addf %57, %59 : vector<128x32xf32>
    %61 = vector.shape_cast %3 : vector<8x16x32xf32> to vector<128x32xf32>
    %62 = arith.addf %60, %61 : vector<128x32xf32>
    %cst_64 = arith.constant 0.000000e+00 : f32
    %63 = vector.broadcast %cst_64 : f32 to vector<128x32xf32>
    %64 = arith.maximumf %62, %63 : vector<128x32xf32>
    %65 = vector.shape_cast %64 : vector<128x32xf32> to vector<8x16x32xf32>
    %c0_65 = arith.constant 0 : index
    %c0_66 = arith.constant 0 : index
    %c0_67 = arith.constant 0 : index
    %c0_68 = arith.constant 0 : index
    %66 = vector.load %arg9[%c0_65, %c0_66, %c0_67, %c0_68] : memref<1x8x16x32xf32, #tpu.memory_space<vmem>>, vector<1x8x16x32xf32>
    %67 = vector.shape_cast %66 : vector<1x8x16x32xf32> to vector<8x16x32xf32>
    %68 = vector.shape_cast %65 : vector<8x16x32xf32> to vector<1x8x16x32xf32>
    tpu.vector_store %arg9[%c0_65, %c0_66, %c0_67, %c0_68], %68 {strides = array<i32>} : memref<1x8x16x32xf32, #tpu.memory_space<vmem>>, vector<1x8x16x32xf32>,
    return
  }
  func.func @transform_0(%arg0: i32, %arg1: i32) -> (i32, i32, i32, i32) {
    %c0_i32 = arith.constant 0 : i32
    %c0_i32_0 = arith.constant 0 : i32
    %c0_i32_1 = arith.constant 0 : i32
    %c0_i32_2 = arith.constant 0 : i32
    return %arg0, %c0_i32, %c0_i32_0, %c0_i32_1 : i32, i32, i32, i32
  }
  func.func @transform_1(%arg0: i32, %arg1: i32) -> (i32, i32) {
    %c0_i32 = arith.constant 0 : i32
    %c0_i32_0 = arith.constant 0 : i32
    %c0_i32_1 = arith.constant 0 : i32
    return %c0_i32, %c0_i32_0 : i32, i32
  }
  func.func @transform_2(%arg0: i32, %arg1: i32) -> (i32, i32) {
    %c0_i32 = arith.constant 0 : i32
    %c0_i32_0 = arith.constant 0 : i32
    %c0_i32_1 = arith.constant 0 : i32
    return %c0_i32, %c0_i32_0 : i32, i32
  }
  func.func @transform_3(%arg0: i32, %arg1: i32) -> (i32, i32) {
    %c0_i32 = arith.constant 0 : i32
    %c0_i32_0 = arith.constant 0 : i32
    %c0_i32_1 = arith.constant 0 : i32
    return %c0_i32, %c0_i32_0 : i32, i32
  }
  func.func @transform_4(%arg0: i32, %arg1: i32) -> (i32, i32) {
    %c0_i32 = arith.constant 0 : i32
    %c0_i32_0 = arith.constant 0 : i32
    %c0_i32_1 = arith.constant 0 : i32
    return %c0_i32, %c0_i32_0 : i32, i32
  }
  func.func @transform_5(%arg0: i32, %arg1: i32) -> (i32, i32) {
    %c0_i32 = arith.constant 0 : i32
    %c0_i32_0 = arith.constant 0 : i32
    %c0_i32_1 = arith.constant 0 : i32
    return %c0_i32, %c0_i32_0 : i32, i32
  }
  func.func @transform_6(%arg0: i32, %arg1: i32) -> (i32, i32) {
    %c0_i32 = arith.constant 0 : i32
    %c0_i32_0 = arith.constant 0 : i32
    %c0_i32_1 = arith.constant 0 : i32
    return %c0_i32, %c0_i32_0 : i32, i32
  }
  func.func @transform_7(%arg0: i32, %arg1: i32) -> (i32, i32, i32, i32) {
    %c0_i32 = arith.constant 0 : i32
    %c0_i32_0 = arith.constant 0 : i32
    %c0_i32_1 = arith.constant 0 : i32
    return %arg0, %arg1, %c0_i32, %c0_i32_0 : i32, i32, i32, i32
  }
}

</mosaic_0001>

<llo_original>
// kernel: tpu_custom_call.1
$region0: #{tpu_custom_call.1}
  #allocation0 [shape = 'u32[]', space=smem, size = 0x4, offset = 0x4, fixed_abs, tag = 'smem constant byte address 0x4 - core index']
  #allocation1 [shape = 'u32[144,128]{1,0:T(1,128)}', space=vmem, size = 0x12000, scoped, tag = 'internal scratch']
  #allocation2 [shape = 'f32[10,18,8]{2,1,0:T(8,128)}', space=vmem, size = 0x1e000, scoped, tag = 'scratch operand']
  %s0 = inlined_call_operand.hbm [shape: f32[2,16,16,32], index: 0, kind: input, shape index: {}]
  %s1 = inlined_call_operand.vmem [shape: bf16[32,8], index: 1, kind: input, shape index: {}]
  %s2 = inlined_call_operand.vmem [shape: bf16[72,8], index: 2, kind: input, shape index: {}]
  %s3 = inlined_call_operand.vmem [shape: bf16[8,32], index: 3, kind: input, shape index: {}]
  %s4 = inlined_call_operand.vmem [shape: f32[1,8], index: 4, kind: input, shape index: {}]
  %s5 = inlined_call_operand.vmem [shape: f32[1,8], index: 5, kind: input, shape index: {}]
  %s6 = inlined_call_operand.vmem [shape: f32[1,32], index: 6, kind: input, shape index: {}]
  %s7 = inlined_call_operand.hbm [shape: f32[2,16,16,32], index: 7, kind: output, shape index: {}]
  %s8 = sld [smem:[#allocation0]]
  $region73: #{tpu_custom_call.1} parent=0
    _
  %s10 = ssub.s32 1, %s8
  %s11 = scalar_select 0, %s10, %s8
  $region1: #{tpu_custom_call.1} parent=0
    #allocation3 [shape = 'u8[262144]{0}', space=vmem, size = 0x40000, scoped, tag = 'input window, operand 0']
    #allocation4 [shape = 's32[2]{0}', space=sflag, size = 0x8, scoped, tag = 'scoped memory for tpu_custom_call.1']
    #allocation5 [shape = 's32[2]{0}', space=sflag, size = 0x8, scoped, tag = 'scoped memory for tpu_custom_call.1']
    #allocation6 [shape = 'u8[131072]{0}', space=vmem, size = 0x20000, scoped, tag = 'output window, operand 0']
    %12 = vsyncpa [#allocation4], 0
    %s13 = scalar_lea.sflag [#allocation4], 1
    %14 = vsyncpa %s13, 0
    %15 = vsyncpa [#allocation5], 0
    %s16 = scalar_lea.sflag [#allocation5], 1
    %17 = vsyncpa %s16, 0
    loop: start=0, step=1, limit=6
    $region2: #{tpu_custom_call.1} parent=1 // loop_pre_header
      _
    $region3: #{tpu_custom_call.1} parent=1 // loop_header
      %s19 = sphi 0, %s23
      %p20 = scmp.ge.s32.totalorder %s19, 6
      %s26 = sphi 0, %s38
      %s27 = sphi 0, %s34
      %s28 = sphi 0, %s26
      %s29 = sphi 0, %s27
      %s30 = sphi 0, %s28
      %s31 = sphi 0, %s29
      %s41 = sphi 0, %s43
      %s44 = sphi 0, %s41
      %s45 = sphi 0, %s44
      %s61 = sphi 0, %s45
      %s65 = sphi 0, %s65
      %s67 = sphi 0, %s65
      %s68 = sphi 0, %s67
      %s82 = sphi 0, %s68
      %s86 = sphi 0, %s86
      %s88 = sphi 0, %s86
      %s89 = sphi 0, %s88
      %s103 = sphi 0, %s89
      %s107 = sphi 0, %s107
      %s109 = sphi 0, %s107
      %s110 = sphi 0, %s109
      %s124 = sphi 0, %s110
      %s128 = sphi 0, %s128
      %s130 = sphi 0, %s128
      %s131 = sphi 0, %s130
      %s145 = sphi 0, %s131
      %s149 = sphi 0, %s149
      %s151 = sphi 0, %s149
      %s152 = sphi 0, %s151
      %s166 = sphi 0, %s152
      %s170 = sphi 0, %s170
      %s172 = sphi 0, %s170
      %s173 = sphi 0, %s172
      %s187 = sphi 0, %s173
      %s195 = sphi 0, %s197
      %s198 = sphi 0, %s195
      %s199 = sphi 0, %s198
      %s215 = sphi 0, %s199
    $region4: #{tpu_custom_call.1} parent=1 // loop_header_branch
      %22 = sbr.rel (%p20) target = $region8
    $region5: #{tpu_custom_call.1} parent=1 // loop_body
      %s24 = ssub.s32 %s19, 1
      %s25 = ssub.s32 %s19, 2
      %s32 = sadd.s32 1, %s27
      %p33 = scmp.ge.s32.totalorder %s32, 2
      %s34 = scalar_select %p33, 0, %s32
      %s35 = sadd.s32 1, %s26
      %s36 = scalar_select %p33, %s35, %s26
      %p37 = scmp.ge.s32.totalorder %s36, 2
      %s38 = scalar_select %p37, 0, %s36
      %s39 = ssub.s32 %s26, %s38
      %p40 = scmp.eq.s32.totalorder %s39, 0
      %s42 = sadd.s32 %s41, 1
      %s43 = scalar_select %p40, %s41, %s42
      %p46 = pneg %p40
      %p47 = scmp.eq.s32.totalorder %s19, 3
      %p48 = por %p46, %p47
      %p49 = scmp.ne.s32.totalorder %s41, %s44
      %p50 = scmp.eq.s32.totalorder %s19, 0
      %p51 = por %p49, %p50
      %p52 = scmp.ne.s32.totalorder %s41, %s44
      %p53 = scmp.eq.s32.totalorder %s24, 3
      %p54 = por %p52, %p53
      %p55 = scmp.ne.s32.totalorder %s44, %s45
      %p56 = scmp.eq.s32.totalorder %s24, 0
      %p57 = por %p55, %p56
      %p58 = scmp.ne.s32.totalorder %s44, %s45
      %p59 = scmp.eq.s32.totalorder %s25, 3
      %p60 = por %p58, %p59
      %p62 = scmp.ne.s32.totalorder %s45, %s61
      %p63 = scmp.eq.s32.totalorder %s25, 0
      %p64 = por %p62, %p63
      %s66 = sadd.s32 %s65, 1
      %p69 = scmp.eq.s32.totalorder %s19, 3
      %p70 = scmp.ne.s32.totalorder %s65, %s67
      %p71 = scmp.eq.s32.totalorder %s19, 0
      %p72 = por %p70, %p71
      %p73 = scmp.ne.s32.totalorder %s65, %s67
      %p74 = scmp.eq.s32.totalorder %s24, 3
      %p75 = por %p73, %p74
      %p76 = scmp.ne.s32.totalorder %s67, %s68
      %p77 = scmp.eq.s32.totalorder %s24, 0
      %p78 = por %p76, %p77
      %p79 = scmp.ne.s32.totalorder %s67, %s68
      %p80 = scmp.eq.s32.totalorder %s25, 3
      %p81 = por %p79, %p80
      %p83 = scmp.ne.s32.totalorder %s68, %s82
      %p84 = scmp.eq.s32.totalorder %s25, 0
      %p85 = por %p83, %p84
      %s87 = sadd.s32 %s86, 1
      %p90 = scmp.eq.s32.totalorder %s19, 3
      %p91 = scmp.ne.s32.totalorder %s86, %s88
      %p92 = scmp.eq.s32.totalorder %s19, 0
      %p93 = por %p91, %p92
      %p94 = scmp.ne.s32.totalorder %s86, %s88
      %p95 = scmp.eq.s32.totalorder %s24, 3
      %p96 = por %p94, %p95
      %p97 = scmp.ne.s32.totalorder %s88, %s89
      %p98 = scmp.eq.s32.totalorder %s24, 0
      %p99 = por %p97, %p98
      %p100 = scmp.ne.s32.totalorder %s88, %s89
      %p101 = scmp.eq.s32.totalorder %s25, 3
      %p102 = por %p100, %p101
      %p104 = scmp.ne.s32.totalorder %s89, %s103
      %p105 = scmp.eq.s32.totalorder %s25, 0
      %p106 = por %p104, %p105
      %s108 = sadd.s32 %s107, 1
      %p111 = scmp.eq.s32.totalorder %s19, 3
      %p112 = scmp.ne.s32.totalorder %s107, %s109
      %p113 = scmp.eq.s32.totalorder %s19, 0
      %p114 = por %p112, %p113
      %p115 = scmp.ne.s32.totalorder %s107, %s109
      %p116 = scmp.eq.s32.totalorder %s24, 3
      %p117 = por %p115, %p116
      %p118 = scmp.ne.s32.totalorder %s109, %s110
      %p119 = scmp.eq.s32.totalorder %s24, 0
      %p120 = por %p118, %p119
      %p121 = scmp.ne.s32.totalorder %s109, %s110
      %p122 = scmp.eq.s32.totalorder %s25, 3
      %p123 = por %p121, %p122
      %p125 = scmp.ne.s32.totalorder %s110, %s124
      %p126 = scmp.eq.s32.totalorder %s25, 0
      %p127 = por %p125, %p126
      %s129 = sadd.s32 %s128, 1
      %p132 = scmp.eq.s32.totalorder %s19, 3
      %p133 = scmp.ne.s32.totalorder %s128, %s130
      %p134 = scmp.eq.s32.totalorder %s19, 0
      %p135 = por %p133, %p134
      %p136 = scmp.ne.s32.totalorder %s128, %s130
      %p137 = scmp.eq.s32.totalorder %s24, 3
      %p138 = por %p136, %p137
      %p139 = scmp.ne.s32.totalorder %s130, %s131
      %p140 = scmp.eq.s32.totalorder %s24, 0
      %p141 = por %p139, %p140
      %p142 = scmp.ne.s32.totalorder %s130, %s131
      %p143 = scmp.eq.s32.totalorder %s25, 3
      %p144 = por %p142, %p143
      %p146 = scmp.ne.s32.totalorder %s131, %s145
      %p147 = scmp.eq.s32.totalorder %s25, 0
      %p148 = por %p146, %p147
      %s150 = sadd.s32 %s149, 1
      %p153 = scmp.eq.s32.totalorder %s19, 3
      %p154 = scmp.ne.s32.totalorder %s149, %s151
      %p155 = scmp.eq.s32.totalorder %s19, 0
      %p156 = por %p154, %p155
      %p157 = scmp.ne.s32.totalorder %s149, %s151
      %p158 = scmp.eq.s32.totalorder %s24, 3
      %p159 = por %p157, %p158
      %p160 = scmp.ne.s32.totalorder %s151, %s152
      %p161 = scmp.eq.s32.totalorder %s24, 0
      %p162 = por %p160, %p161
      %p163 = scmp.ne.s32.totalorder %s151, %s152
      %p164 = scmp.eq.s32.totalorder %s25, 3
      %p165 = por %p163, %p164
      %p167 = scmp.ne.s32.totalorder %s152, %s166
      %p168 = scmp.eq.s32.totalorder %s25, 0
      %p169 = por %p167, %p168
      %s171 = sadd.s32 %s170, 1
      %p174 = scmp.eq.s32.totalorder %s19, 3
      %p175 = scmp.ne.s32.totalorder %s170, %s172
      %p176 = scmp.eq.s32.totalorder %s19, 0
      %p177 = por %p175, %p176
      %p178 = scmp.ne.s32.totalorder %s170, %s172
      %p179 = scmp.eq.s32.totalorder %s24, 3
      %p180 = por %p178, %p179
      %p181 = scmp.ne.s32.totalorder %s172, %s173
      %p182 = scmp.eq.s32.totalorder %s24, 0
      %p183 = por %p181, %p182
      %p184 = scmp.ne.s32.totalorder %s172, %s173
      %p185 = scmp.eq.s32.totalorder %s25, 3
      %p186 = por %p184, %p185
      %p188 = scmp.ne.s32.totalorder %s173, %s187
      %p189 = scmp.eq.s32.totalorder %s25, 0
      %p190 = por %p188, %p189
      %s191 = ssub.s32 %s26, %s38
      %s192 = ssub.s32 %s27, %s34
      %s193 = sor.u32 %s191, %s192
      %p194 = scmp.eq.s32.totalorder %s193, 0
      %s196 = sadd.s32 %s195, 1
      %s197 = scalar_select %p194, %s195, %s196
      %p200 = pneg %p194
      %p201 = scmp.eq.s32.totalorder %s19, 3
      %p202 = por %p200, %p201
      %p203 = scmp.ne.s32.totalorder %s195, %s198
      %p204 = scmp.eq.s32.totalorder %s19, 0
      %p205 = por %p203, %p204
      %p206 = scmp.ne.s32.totalorder %s195, %s198
      %p207 = scmp.eq.s32.totalorder %s24, 3
      %p208 = por %p206, %p207
      %p209 = scmp.ne.s32.totalorder %s198, %s199
      %p210 = scmp.eq.s32.totalorder %s24, 0
      %p211 = por %p209, %p210
      %p212 = scmp.ne.s32.totalorder %s198, %s199
      %p213 = scmp.eq.s32.totalorder %s25, 3
      %p214 = por %p212, %p213
      %p216 = scmp.ne.s32.totalorder %s199, %s215
      %p217 = scmp.eq.s32.totalorder %s25, 0
      %p218 = por %p216, %p217
      %p219 = scmp.le.s32.totalorder 1, %s19
      %p220 = scmp.lt.s32.totalorder %s19, 5
      %p221 = pnand %p219, %p220
      %p222 = pneg %p221
      // Predicated region
      $region9: #{tpu_custom_call.1} parent=5 // pred_check
        _
      $region10: #{tpu_custom_call.1} parent=5 // pred_check_branch
        %224 = sbr.rel (%p221) target = $region12
      $region11: #{tpu_custom_call.1} parent=5 // pred_region
        %s225 = ssub.s32 %s19, 1
        // Predicated region
        $region13: #{tpu_custom_call.1} parent=11 // pred_check
          %p226 = pneg %p78
        $region14: #{tpu_custom_call.1} parent=11 // pred_check_branch
          %228 = sbr.rel (%p226) target = $region16
        $region15: #{tpu_custom_call.1} parent=11 // pred_region
          _
        $region16: #{tpu_custom_call.1} parent=11 // pred_fallthru
          _
        // Predicated region
        $region17: #{tpu_custom_call.1} parent=11 // pred_check
          %p229 = pneg %p99
        $region18: #{tpu_custom_call.1} parent=11 // pred_check_branch
          %231 = sbr.rel (%p229) target = $region20
        $region19: #{tpu_custom_call.1} parent=11 // pred_region
          _
        $region20: #{tpu_custom_call.1} parent=11 // pred_fallthru
          _
        // Predicated region
        $region21: #{tpu_custom_call.1} parent=11 // pred_check
          %p232 = pneg %p120
        $region22: #{tpu_custom_call.1} parent=11 // pred_check_branch
          %234 = sbr.rel (%p232) target = $region24
        $region23: #{tpu_custom_call.1} parent=11 // pred_region
          _
        $region24: #{tpu_custom_call.1} parent=11 // pred_fallthru
          _
        // Predicated region
        $region25: #{tpu_custom_call.1} parent=11 // pred_check
          %p235 = pneg %p141
        $region26: #{tpu_custom_call.1} parent=11 // pred_check_branch
          %237 = sbr.rel (%p235) target = $region28
        $region27: #{tpu_custom_call.1} parent=11 // pred_region
          _
        $region28: #{tpu_custom_call.1} parent=11 // pred_fallthru
          _
        // Predicated region
        $region29: #{tpu_custom_call.1} parent=11 // pred_check
          %p238 = pneg %p162
        $region30: #{tpu_custom_call.1} parent=11 // pred_check_branch
          %240 = sbr.rel (%p238) target = $region32
        $region31: #{tpu_custom_call.1} parent=11 // pred_region
          _
        $region32: #{tpu_custom_call.1} parent=11 // pred_fallthru
          _
        // Predicated region
        $region33: #{tpu_custom_call.1} parent=11 // pred_check
          %p241 = pneg %p183
        $region34: #{tpu_custom_call.1} parent=11 // pred_check_branch
          %243 = sbr.rel (%p241) target = $region36
        $region35: #{tpu_custom_call.1} parent=11 // pred_region
          _
        $region36: #{tpu_custom_call.1} parent=11 // pred_fallthru
          _
      $region12: #{tpu_custom_call.1} parent=5 // pred_fallthru
        _
      %p244 = scmp.lt.s32.totalorder %s19, 4
      // Predicated region
      $region37: #{tpu_custom_call.1} parent=5 // pred_check
        %p245 = pneg %p244
      $region38: #{tpu_custom_call.1} parent=5 // pred_check_branch
        %247 = sbr.rel (%p245) target = $region40
      $region39: #{tpu_custom_call.1} parent=5 // pred_region
        // Predicated region
        $region41: #{tpu_custom_call.1} parent=39 // pred_check
          %p248 = pneg %p51
        $region42: #{tpu_custom_call.1} parent=39 // pred_check_branch
          %250 = sbr.rel (%p248) target = $region44
        $region43: #{tpu_custom_call.1} parent=39 // pred_region
          %s251 = sand.u32 %s41, 1
          %s252 = scalar_lea.sflag [#allocation4], %s251
          %s253 = sand.u32 %s41, 1
          %s254 = smul.addr %s253, 256
          %s255 = scalar_lea.vmem [#allocation3], %s254
          %s257 = ssub.s32 4096, 4096
          %258 = vsyncadd %s252, %s257
          %s259 = smul.addr %s26, 32
          %s260 = smul.addr %s259, 128
          %s261 = scalar_lea.hbm %s0, %s260
          %s262 = sshll.u32 %s255, 4
          %s263 = int_to_ptr.vmem [resolvable:$true] %s262
          %268 = dma.hbm_to_vmem [thread:$0]  %s261, 4096, %s263, %s252, 128, 128, 8
        $region44: #{tpu_custom_call.1} parent=39 // pred_fallthru
          _
      $region40: #{tpu_custom_call.1} parent=5 // pred_fallthru
        _
      %p269 = scmp.le.s32.totalorder 1, %s19
      %p270 = scmp.lt.s32.totalorder %s19, 5
      %p271 = pnand %p269, %p270
      %p272 = pneg %p271
      // Predicated region
      $region45: #{tpu_custom_call.1} parent=5 // pred_check
        _
      $region46: #{tpu_custom_call.1} parent=5 // pred_check_branch
        %274 = sbr.rel (%p271) target = $region48
      $region47: #{tpu_custom_call.1} parent=5 // pred_region
        %s275 = ssub.s32 %s19, 1
        %s276 = sand.u32 %s44, 1
        %s277 = scalar_lea.sflag [#allocation4], %s276
        %s278 = sand.u32 %s44, 1
        %s279 = smul.addr %s278, 256
        %s280 = scalar_lea.vmem [#allocation3], %s279
        // Predicated region
        $region49: #{tpu_custom_call.1} parent=47 // pred_check
          %p281 = pneg %p57
        $region50: #{tpu_custom_call.1} parent=47 // pred_check_branch
          %283 = sbr.rel (%p281) target = $region52
        $region51: #{tpu_custom_call.1} parent=47 // pred_region
          %284 = dma.done %s277, 4096
        $region52: #{tpu_custom_call.1} parent=47 // pred_fallthru
          _
        %s285 = sand.u32 %s44, 1
        %s286 = scalar_lea.sflag [#allocation4], %s285
        %s287 = sand.u32 %s44, 1
        %s288 = smul.addr %s287, 256
        %s289 = scalar_lea.vmem [#allocation3], %s288
        %p290 = pneg %p57
        %p291 = pneg %p54
        %p292 = pneg %p78
        %p293 = pneg %p75
        %p294 = pneg %p99
        %p295 = pneg %p96
        %p296 = pneg %p120
        %p297 = pneg %p117
        %p298 = pneg %p141
        %p299 = pneg %p138
        %p300 = pneg %p162
        %p301 = pneg %p159
        %p302 = pneg %p183
        %p303 = pneg %p180
        %p304 = pneg %p211
        %p305 = pneg %p208
        %s306 = sand.u32 %s198, 1
        %s307 = scalar_lea.sflag [#allocation5], %s306
        %s308 = sand.u32 %s198, 1
        %s309 = smul.addr %s308, 128
        %s310 = scalar_lea.vmem [#allocation6], %s309
        %s311 = smul.u32 8, %s29
        %s313 = smul.u32 %s29, 8
        %s314 = smul.u32 %s313, 16
        %s315 = scalar_lea.vmem %s280, %s314 [#allocation3]
        %v316 = vld [vmem:[%s315] sm:$0xff]
        %v317 = vld [vmem:[%s315 + $0x8] sm:$0xff]
        %v318 = vld [vmem:[%s315 + $0x10] sm:$0xff]
        %v319 = vld [vmem:[%s315 + $0x18] sm:$0xff]
        %v320 = vld [vmem:[%s315 + $0x20] sm:$0xff]
        %v321 = vld [vmem:[%s315 + $0x28] sm:$0xff]
        %v322 = vld [vmem:[%s315 + $0x30] sm:$0xff]
        %v323 = vld [vmem:[%s315 + $0x38] sm:$0xff]
        %v324 = vld [vmem:[%s315 + $0x40] sm:$0xff]
        %v325 = vld [vmem:[%s315 + $0x48] sm:$0xff]
        %v326 = vld [vmem:[%s315 + $0x50] sm:$0xff]
        %v327 = vld [vmem:[%s315 + $0x58] sm:$0xff]
        %v328 = vld [vmem:[%s315 + $0x60] sm:$0xff]
        %v329 = vld [vmem:[%s315 + $0x68] sm:$0xff]
        %v330 = vld [vmem:[%s315 + $0x70] sm:$0xff]
        %v331 = vld [vmem:[%s315 + $0x78] sm:$0xff]
        %s332 = ssub.s32 %s313, 1
        %p333 = scmp.gt.s32.totalorder %s332, 0
        %s334 = scalar_select %p333, %s332, 0
        %s335 = smul.u32 %s334, 16
        %s336 = scalar_lea.vmem %s280, %s335 [#allocation3]
        %v337 = vld [vmem:[%s336] sm:$0xff]
        %v338 = vld [vmem:[%s336 + $0x8] sm:$0xff]
        %s339 = sadd.s32 %s313, 8
        %p340 = scmp.lt.s32.totalorder %s339, 15
        %s341 = scalar_select %p340, %s339, 15
        %s342 = smul.u32 %s341, 16
        %s343 = scalar_lea.vmem %s280, %s342 [#allocation3]
        %v344 = vld [vmem:[%s343] sm:$0xff]
        %v345 = vld [vmem:[%s343 + $0x8] sm:$0xff]
        %v346 = vpack.c.bf16 %v338, %v337
        %v347 = vpack.c.bf16 %v317, %v316
        %v348 = vpack.c.bf16 %v319, %v318
        %v349 = vpack.c.bf16 %v321, %v320
        %v350 = vpack.c.bf16 %v323, %v322
        %v351 = vpack.c.bf16 %v325, %v324
        %v352 = vpack.c.bf16 %v327, %v326
        %v353 = vpack.c.bf16 %v329, %v328
        %v354 = vpack.c.bf16 %v331, %v330
        %v355 = vpack.c.bf16 %v345, %v344
        %v356 = vld [vmem:[%s1] sm:$0xf]
        %v357 = vld [vmem:[%s1 + $0x4] sm:$0xf]
        %v358 = vld [vmem:[%s1 + $0x8] sm:$0xf]
        %v359 = vld [vmem:[%s1 + $0xc] sm:$0xf]
        %v360 = vld [vmem:[%s4] sm:$0x1]
        %v362 = vlaneseq
        %v363 = vshrl.u32 %v362, 7
        %v364 = vsub.s32 0, %v363
        %v365 = vrot.slane %v360, %v364
        %v371 = vunpack.c.l.b16 %v356
        %v372 = vunpack.c.l.b16 %v357
        %v373 = vunpack.c.l.b16 %v358
        %v374 = vunpack.c.l.b16 %v359
        %v375 = vpack.c.b16 %v372, %v371
        %v376 = vpack.c.b16 %v374, %v373
        %vm379 = vcmask 261120
        %v381 = vsel %vm379, %v346, 0
        %v384 = vsel %vm379, %v347, 0
        %v387 = vsel %vm379, %v348, 0
        %v390 = vsel %vm379, %v349, 0
        %v393 = vsel %vm379, %v350, 0
        %v396 = vsel %vm379, %v351, 0
        %v399 = vsel %vm379, %v352, 0
        %v402 = vsel %vm379, %v353, 0
        %v405 = vsel %vm379, %v354, 0
        %v408 = vsel %vm379, %v355, 0
        %410 = vmatprep.subr.bf16.mxu0 0
        %411 = vmatpush1.bf16.msra.mxu0 0
        %412 = vmatprep.subr.bf16.mxu0 0
        %413 = vmatpush1.bf16.msra.mxu0 0
        %414 = vmatprep.subr.bf16.mxu0 0
        %415 = vmatpush1.bf16.msra.mxu0 0
        %416 = vmatprep.subr.bf16.mxu0 0
        %417 = vmatpush1.bf16.msra.mxu0 0
        %418 = vmatprep.subr.bf16.mxu0 0
        %419 = vmatpush1.bf16.msra.mxu0 0
        %420 = vmatprep.subr.bf16.mxu0 0
        %421 = vmatpush1.bf16.msra.mxu0 0
        %422 = vmatprep.subr.bf16.mxu0 0
        %423 = vmatpush1.bf16.msra.mxu0 %v376
        %424 = vmatprep.subr.bf16.mxu0 0
        %425 = vmatpush1.bf16.msra.mxu0 %v375
        %426 = vmatprep.subr.bf16.mxu0 0
        %427 = vmatpush2.bf16.msra.mxu0 0
        %428 = vmatprep.subr.bf16.mxu0 0
        %429 = vmatpush2.bf16.msra.mxu0 0
        %430 = vmatprep.subr.bf16.mxu0 0
        %431 = vmatpush2.bf16.msra.mxu0 0
        %432 = vmatprep.subr.bf16.mxu0 0
        %433 = vmatpush2.bf16.msra.mxu0 0
        %434 = vmatprep.subr.bf16.mxu0 0
        %435 = vmatpush2.bf16.msra.mxu0 0
        %436 = vmatprep.subr.bf16.mxu0 0
        %437 = vmatpush2.bf16.msra.mxu0 0
        %438 = vmatprep.subr.bf16.mxu0 0
        %439 = vmatpush2.bf16.msra.mxu0 0
        %440 = vmatprep.subr.bf16.mxu0 0
        %441 = vmatpush2.bf16.msra.mxu0 0
        %442 = vmatprep.mubr.bf16.mxu0 0
        %443 = vmatmul.mubr.bf16.gmra.mxu0 %v381
        %v444 = vpop.f32.mrf.mxu0
        %v445 = vadd.f32 %v365, %v444
        %v446 = vpop.f32.mrf.mxu0
        %v447 = vpop.f32.mrf.mxu0
        %v448 = vadd.f32 %v365, %v447
        %v449 = vpop.f32.mrf.mxu0
        %450 = vmatprep.mubr.bf16.mxu0 0
        %451 = vmatmul.mubr.bf16.gmra.mxu0 %v384
        %v452 = vpop.f32.mrf.mxu0
        %v453 = vadd.f32 %v365, %v452
        %v454 = vpop.f32.mrf.mxu0
        %v455 = vpop.f32.mrf.mxu0
        %v456 = vadd.f32 %v365, %v455
        %v457 = vpop.f32.mrf.mxu0
        %458 = vmatprep.mubr.bf16.mxu0 0
        %459 = vmatmul.mubr.bf16.gmra.mxu0 %v387
        %v460 = vpop.f32.mrf.mxu0
        %v461 = vadd.f32 %v365, %v460
        %v462 = vpop.f32.mrf.mxu0
        %v463 = vpop.f32.mrf.mxu0
        %v464 = vadd.f32 %v365, %v463
        %v465 = vpop.f32.mrf.mxu0
        %466 = vmatprep.mubr.bf16.mxu0 0
        %467 = vmatmul.mubr.bf16.gmra.mxu0 %v390
        %v468 = vpop.f32.mrf.mxu0
        %v469 = vadd.f32 %v365, %v468
        %v470 = vpop.f32.mrf.mxu0
        %v471 = vpop.f32.mrf.mxu0
        %v472 = vadd.f32 %v365, %v471
        %v473 = vpop.f32.mrf.mxu0
        %474 = vmatprep.mubr.bf16.mxu0 0
        %475 = vmatmul.mubr.bf16.gmra.mxu0 %v393
        %v476 = vpop.f32.mrf.mxu0
        %v477 = vadd.f32 %v365, %v476
        %v478 = vpop.f32.mrf.mxu0
        %v479 = vpop.f32.mrf.mxu0
        %v480 = vadd.f32 %v365, %v479
        %v481 = vpop.f32.mrf.mxu0
        %482 = vmatprep.mubr.bf16.mxu0 0
        %483 = vmatmul.mubr.bf16.gmra.mxu0 %v396
        %v484 = vpop.f32.mrf.mxu0
        %v485 = vadd.f32 %v365, %v484
        %v486 = vpop.f32.mrf.mxu0
        %v487 = vpop.f32.mrf.mxu0
        %v488 = vadd.f32 %v365, %v487
        %v489 = vpop.f32.mrf.mxu0
        %490 = vmatprep.mubr.bf16.mxu0 0
        %491 = vmatmul.mubr.bf16.gmra.mxu0 %v399
        %v492 = vpop.f32.mrf.mxu0
        %v493 = vadd.f32 %v365, %v492
        %v494 = vpop.f32.mrf.mxu0
        %v495 = vpop.f32.mrf.mxu0
        %v496 = vadd.f32 %v365, %v495
        %v497 = vpop.f32.mrf.mxu0
        %498 = vmatprep.mubr.bf16.mxu0 0
        %499 = vmatmul.mubr.bf16.gmra.mxu0 %v402
        %v500 = vpop.f32.mrf.mxu0
        %v501 = vadd.f32 %v365, %v500
        %v502 = vpop.f32.mrf.mxu0
        %v503 = vpop.f32.mrf.mxu0
        %v504 = vadd.f32 %v365, %v503
        %v505 = vpop.f32.mrf.mxu0
        %506 = vmatprep.mubr.bf16.mxu0 0
        %507 = vmatmul.mubr.bf16.gmra.mxu0 %v405
        %v508 = vpop.f32.mrf.mxu0
        %v509 = vadd.f32 %v365, %v508
        %v510 = vpop.f32.mrf.mxu0
        %v511 = vpop.f32.mrf.mxu0
        %v512 = vadd.f32 %v365, %v511
        %v513 = vpop.f32.mrf.mxu0
        %514 = vmatprep.mubr.bf16.mxu0 0
        %515 = vmatmul.mubr.bf16.gmra.mxu0 %v408
        %v516 = vpop.f32.mrf.mxu0
        %v517 = vadd.f32 %v365, %v516
        %v518 = vpop.f32.mrf.mxu0
        %v519 = vpop.f32.mrf.mxu0
        %v520 = vadd.f32 %v365, %v519
        %v521 = vpop.f32.mrf.mxu0
        %522 = vdwg.mxu0
        %v523 = vmax.f32 %v445, 0.0
        %v524 = vmax.f32 %v448, 0.0
        %v525 = vmax.f32 %v453, 0.0
        %v526 = vmax.f32 %v456, 0.0
        %v527 = vmax.f32 %v461, 0.0
        %v528 = vmax.f32 %v464, 0.0
        %v529 = vmax.f32 %v469, 0.0
        %v530 = vmax.f32 %v472, 0.0
        %v531 = vmax.f32 %v477, 0.0
        %v532 = vmax.f32 %v480, 0.0
        %v533 = vmax.f32 %v485, 0.0
        %v534 = vmax.f32 %v488, 0.0
        %v535 = vmax.f32 %v493, 0.0
        %v536 = vmax.f32 %v496, 0.0
        %v537 = vmax.f32 %v501, 0.0
        %v538 = vmax.f32 %v504, 0.0
        %v539 = vmax.f32 %v509, 0.0
        %v540 = vmax.f32 %v512, 0.0
        %v541 = vmax.f32 %v517, 0.0
        %v542 = vmax.f32 %v520, 0.0
        %vm543 = vcmask 64512
        %544 = vst.msk [vmem:[#allocation2 + $0x1] sm:$0xff] %vm543, %v523
        %545 = vst.msk [vmem:[#allocation2 + $0x9] sm:$0xff] %vm543, %v524
        %546 = vst.msk [vmem:[#allocation2 + $0x19] sm:$0xff] %vm543, %v525
        %547 = vst.msk [vmem:[#allocation2 + $0x21] sm:$0xff] %vm543, %v526
        %548 = vst.msk [vmem:[#allocation2 + $0x31] sm:$0xff] %vm543, %v527
        %549 = vst.msk [vmem:[#allocation2 + $0x39] sm:$0xff] %vm543, %v528
        %550 = vst.msk [vmem:[#allocation2 + $0x49] sm:$0xff] %vm543, %v529
        %551 = vst.msk [vmem:[#allocation2 + $0x51] sm:$0xff] %vm543, %v530
        %552 = vst.msk [vmem:[#allocation2 + $0x61] sm:$0xff] %vm543, %v531
        %553 = vst.msk [vmem:[#allocation2 + $0x69] sm:$0xff] %vm543, %v532
        %554 = vst.msk [vmem:[#allocation2 + $0x79] sm:$0xff] %vm543, %v533
        %555 = vst.msk [vmem:[#allocation2 + $0x81] sm:$0xff] %vm543, %v534
        %556 = vst.msk [vmem:[#allocation2 + $0x91] sm:$0xff] %vm543, %v535
        %557 = vst.msk [vmem:[#allocation2 + $0x99] sm:$0xff] %vm543, %v536
        %558 = vst.msk [vmem:[#allocation2 + $0xa9] sm:$0xff] %vm543, %v537
        %559 = vst.msk [vmem:[#allocation2 + $0xb1] sm:$0xff] %vm543, %v538
        %560 = vst.msk [vmem:[#allocation2 + $0xc1] sm:$0xff] %vm543, %v539
        %561 = vst.msk [vmem:[#allocation2 + $0xc9] sm:$0xff] %vm543, %v540
        %562 = vst.msk [vmem:[#allocation2 + $0xd9] sm:$0xff] %vm543, %v541
        %563 = vst.msk [vmem:[#allocation2 + $0xe1] sm:$0xff] %vm543, %v542
        %vm564 = vcmask 57344
        %565 = vst.msk [vmem:[#allocation2] sm:$0x1] %vm564, 0.0
        %566 = vst.msk [vmem:[#allocation2 + $0x18] sm:$0x1] %vm564, 0.0
        %567 = vst.msk [vmem:[#allocation2 + $0x30] sm:$0x1] %vm564, 0.0
        %568 = vst.msk [vmem:[#allocation2 + $0x48] sm:$0x1] %vm564, 0.0
        %569 = vst.msk [vmem:[#allocation2 + $0x60] sm:$0x1] %vm564, 0.0
        %570 = vst.msk [vmem:[#allocation2 + $0x78] sm:$0x1] %vm564, 0.0
        %571 = vst.msk [vmem:[#allocation2 + $0x90] sm:$0x1] %vm564, 0.0
        %572 = vst.msk [vmem:[#allocation2 + $0xa8] sm:$0x1] %vm564, 0.0
        %573 = vst.msk [vmem:[#allocation2 + $0xc0] sm:$0x1] %vm564, 0.0
        %574 = vst.msk [vmem:[#allocation2 + $0xd8] sm:$0x1] %vm564, 0.0
        %575 = vst.msk [vmem:[#allocation2 + $0x11] sm:$0x1] %vm564, 0.0
        %576 = vst.msk [vmem:[#allocation2 + $0x29] sm:$0x1] %vm564, 0.0
        %577 = vst.msk [vmem:[#allocation2 + $0x41] sm:$0x1] %vm564, 0.0
        %578 = vst.msk [vmem:[#allocation2 + $0x59] sm:$0x1] %vm564, 0.0
        %579 = vst.msk [vmem:[#allocation2 + $0x71] sm:$0x1] %vm564, 0.0
        %580 = vst.msk [vmem:[#allocation2 + $0x89] sm:$0x1] %vm564, 0.0
        %581 = vst.msk [vmem:[#allocation2 + $0xa1] sm:$0x1] %vm564, 0.0
        %582 = vst.msk [vmem:[#allocation2 + $0xb9] sm:$0x1] %vm564, 0.0
        %583 = vst.msk [vmem:[#allocation2 + $0xd1] sm:$0x1] %vm564, 0.0
        %584 = vst.msk [vmem:[#allocation2 + $0xe9] sm:$0x1] %vm564, 0.0
        %p585 = scmp.eq.s32.totalorder %s29, 0
        // Predicated region
        $region53: #{tpu_custom_call.1} parent=47 // pred_check
          %p586 = pneg %p585
        $region54: #{tpu_custom_call.1} parent=47 // pred_check_branch
          %588 = sbr.rel (%p586) target = $region56
        $region55: #{tpu_custom_call.1} parent=47 // pred_region
          %589 = vst.msk [vmem:[#allocation2] sm:$0xff] %vm543, 0.0
          %590 = vst.msk [vmem:[#allocation2 + $0x8] sm:$0xff] %vm543, 0.0
          %vm591 = vcmask 58368
          %592 = vst.msk [vmem:[#allocation2 + $0x10] sm:$0x3] %vm591, 0.0
        $region56: #{tpu_custom_call.1} parent=47 // pred_fallthru
          _
        %p593 = scmp.eq.s32.totalorder %s29, 1
        // Predicated region
        $region57: #{tpu_custom_call.1} parent=47 // pred_check
          %p594 = pneg %p593
        $region58: #{tpu_custom_call.1} parent=47 // pred_check_branch
          %596 = sbr.rel (%p594) target = $region60
        $region59: #{tpu_custom_call.1} parent=47 // pred_region
          %s597 = scalar_lea.vmem [#allocation2], 216
          %598 = vst.msk [vmem:[%s597] sm:$0xff] %vm543, 0.0
          %599 = vst.msk [vmem:[%s597 + $0x8] sm:$0xff] %vm543, 0.0
          %vm600 = vcmask 58368
          %601 = vst.msk [vmem:[%s597 + $0x10] sm:$0x3] %vm600, 0.0
        $region60: #{tpu_custom_call.1} parent=47 // pred_fallthru
          _
        %v602 = vld [vmem:[#allocation2] sm:$0xff]
        %v603 = vld [vmem:[#allocation2 + $0x8] sm:$0xff]
        %v604 = vld [vmem:[#allocation2 + $0x18] sm:$0xff]
        %v605 = vld [vmem:[#allocation2 + $0x20] sm:$0xff]
        %v606 = vld [vmem:[#allocation2 + $0x30] sm:$0xff]
        %v607 = vld [vmem:[#allocation2 + $0x38] sm:$0xff]
        %v608 = vld [vmem:[#allocation2 + $0x48] sm:$0xff]
        %v609 = vld [vmem:[#allocation2 + $0x50] sm:$0xff]
        %v610 = vld [vmem:[#allocation2 + $0x60] sm:$0xff]
        %v611 = vld [vmem:[#allocation2 + $0x68] sm:$0xff]
        %v612 = vld [vmem:[#allocation2 + $0x78] sm:$0xff]
        %v613 = vld [vmem:[#allocation2 + $0x80] sm:$0xff]
        %v614 = vld [vmem:[#allocation2 + $0x90] sm:$0xff]
        %v615 = vld [vmem:[#allocation2 + $0x98] sm:$0xff]
        %v616 = vld [vmem:[#allocation2 + $0xa8] sm:$0xff]
        %v617 = vld [vmem:[#allocation2 + $0xb0] sm:$0xff]
        %v618 = vld [vmem:[#allocation2 + $0x1] sm:$0xff]
        %v619 = vld [vmem:[#allocation2 + $0x9] sm:$0xff]
        %v620 = vld [vmem:[#allocation2 + $0x19] sm:$0xff]
        %v621 = vld [vmem:[#allocation2 + $0x21] sm:$0xff]
        %v622 = vld [vmem:[#allocation2 + $0x31] sm:$0xff]
        %v623 = vld [vmem:[#allocation2 + $0x39] sm:$0xff]
        %v624 = vld [vmem:[#allocation2 + $0x49] sm:$0xff]
        %v625 = vld [vmem:[#allocation2 + $0x51] sm:$0xff]
        %v626 = vld [vmem:[#allocation2 + $0x61] sm:$0xff]
        %v627 = vld [vmem:[#allocation2 + $0x69] sm:$0xff]
        %v628 = vld [vmem:[#allocation2 + $0x79] sm:$0xff]
        %v629 = vld [vmem:[#allocation2 + $0x81] sm:$0xff]
        %v630 = vld [vmem:[#allocation2 + $0x91] sm:$0xff]
        %v631 = vld [vmem:[#allocation2 + $0x99] sm:$0xff]
        %v632 = vld [vmem:[#allocation2 + $0xa9] sm:$0xff]
        %v633 = vld [vmem:[#allocation2 + $0xb1] sm:$0xff]
        %v634 = vld [vmem:[#allocation2 + $0x2] sm:$0xff]
        %v635 = vld [vmem:[#allocation2 + $0xa] sm:$0xff]
        %v636 = vld [vmem:[#allocation2 + $0x1a] sm:$0xff]
        %v637 = vld [vmem:[#allocation2 + $0x22] sm:$0xff]
        %v638 = vld [vmem:[#allocation2 + $0x32] sm:$0xff]
        %v639 = vld [vmem:[#allocation2 + $0x3a] sm:$0xff]
        %v640 = vld [vmem:[#allocation2 + $0x4a] sm:$0xff]
        %v641 = vld [vmem:[#allocation2 + $0x52] sm:$0xff]
        %v642 = vld [vmem:[#allocation2 + $0x62] sm:$0xff]
        %v643 = vld [vmem:[#allocation2 + $0x6a] sm:$0xff]
        %v644 = vld [vmem:[#allocation2 + $0x7a] sm:$0xff]
        %v645 = vld [vmem:[#allocation2 + $0x82] sm:$0xff]
        %v646 = vld [vmem:[#allocation2 + $0x92] sm:$0xff]
        %v647 = vld [vmem:[#allocation2 + $0x9a] sm:$0xff]
        %v648 = vld [vmem:[#allocation2 + $0xaa] sm:$0xff]
        %v649 = vld [vmem:[#allocation2 + $0xb2] sm:$0xff]
        %s650 = scalar_lea.vmem [#allocation2], 24
        %v651 = vld [vmem:[%s650] sm:$0xff]
        %v652 = vld [vmem:[%s650 + $0x8] sm:$0xff]
        %v653 = vld [vmem:[%s650 + $0x18] sm:$0xff]
        %v654 = vld [vmem:[%s650 + $0x20] sm:$0xff]
        %v655 = vld [vmem:[%s650 + $0x30] sm:$0xff]
        %v656 = vld [vmem:[%s650 + $0x38] sm:$0xff]
        %v657 = vld [vmem:[%s650 + $0x48] sm:$0xff]
        %v658 = vld [vmem:[%s650 + $0x50] sm:$0xff]
        %v659 = vld [vmem:[%s650 + $0x60] sm:$0xff]
        %v660 = vld [vmem:[%s650 + $0x68] sm:$0xff]
        %v661 = vld [vmem:[%s650 + $0x78] sm:$0xff]
        %v662 = vld [vmem:[%s650 + $0x80] sm:$0xff]
        %v663 = vld [vmem:[%s650 + $0x90] sm:$0xff]
        %v664 = vld [vmem:[%s650 + $0x98] sm:$0xff]
        %v665 = vld [vmem:[%s650 + $0xa8] sm:$0xff]
        %v666 = vld [vmem:[%s650 + $0xb0] sm:$0xff]
        %v667 = vld [vmem:[%s650 + $0x1] sm:$0xff]
        %v668 = vld [vmem:[%s650 + $0x9] sm:$0xff]
        %v669 = vld [vmem:[%s650 + $0x19] sm:$0xff]
        %v670 = vld [vmem:[%s650 + $0x21] sm:$0xff]
        %v671 = vld [vmem:[%s650 + $0x31] sm:$0xff]
        %v672 = vld [vmem:[%s650 + $0x39] sm:$0xff]
        %v673 = vld [vmem:[%s650 + $0x49] sm:$0xff]
        %v674 = vld [vmem:[%s650 + $0x51] sm:$0xff]
        %v675 = vld [vmem:[%s650 + $0x61] sm:$0xff]
        %v676 = vld [vmem:[%s650 + $0x69] sm:$0xff]
        %v677 = vld [vmem:[%s650 + $0x79] sm:$0xff]
        %v678 = vld [vmem:[%s650 + $0x81] sm:$0xff]
        %v679 = vld [vmem:[%s650 + $0x91] sm:$0xff]
        %v680 = vld [vmem:[%s650 + $0x99] sm:$0xff]
        %v681 = vld [vmem:[%s650 + $0xa9] sm:$0xff]
        %v682 = vld [vmem:[%s650 + $0xb1] sm:$0xff]
        %v683 = vld [vmem:[%s650 + $0x2] sm:$0xff]
        %v684 = vld [vmem:[%s650 + $0xa] sm:$0xff]
        %v685 = vld [vmem:[%s650 + $0x1a] sm:$0xff]
        %v686 = vld [vmem:[%s650 + $0x22] sm:$0xff]
        %v687 = vld [vmem:[%s650 + $0x32] sm:$0xff]
        %v688 = vld [vmem:[%s650 + $0x3a] sm:$0xff]
        %v689 = vld [vmem:[%s650 + $0x4a] sm:$0xff]
        %v690 = vld [vmem:[%s650 + $0x52] sm:$0xff]
        %v691 = vld [vmem:[%s650 + $0x62] sm:$0xff]
        %v692 = vld [vmem:[%s650 + $0x6a] sm:$0xff]
        %v693 = vld [vmem:[%s650 + $0x7a] sm:$0xff]
        %v694 = vld [vmem:[%s650 + $0x82] sm:$0xff]
        %v695 = vld [vmem:[%s650 + $0x92] sm:$0xff]
        %v696 = vld [vmem:[%s650 + $0x9a] sm:$0xff]
        %v697 = vld [vmem:[%s650 + $0xaa] sm:$0xff]
        %v698 = vld [vmem:[%s650 + $0xb2] sm:$0xff]
        %s699 = scalar_lea.vmem [#allocation2], 48
        %v700 = vld [vmem:[%s699] sm:$0xff]
        %v701 = vld [vmem:[%s699 + $0x8] sm:$0xff]
        %v702 = vld [vmem:[%s699 + $0x18] sm:$0xff]
        %v703 = vld [vmem:[%s699 + $0x20] sm:$0xff]
        %v704 = vld [vmem:[%s699 + $0x30] sm:$0xff]
        %v705 = vld [vmem:[%s699 + $0x38] sm:$0xff]
        %v706 = vld [vmem:[%s699 + $0x48] sm:$0xff]
        %v707 = vld [vmem:[%s699 + $0x50] sm:$0xff]
        %v708 = vld [vmem:[%s699 + $0x60] sm:$0xff]
        %v709 = vld [vmem:[%s699 + $0x68] sm:$0xff]
        %v710 = vld [vmem:[%s699 + $0x78] sm:$0xff]
        %v711 = vld [vmem:[%s699 + $0x80] sm:$0xff]
        %v712 = vld [vmem:[%s699 + $0x90] sm:$0xff]
        %v713 = vld [vmem:[%s699 + $0x98] sm:$0xff]
        %v714 = vld [vmem:[%s699 + $0xa8] sm:$0xff]
        %v715 = vld [vmem:[%s699 + $0xb0] sm:$0xff]
        %v716 = vld [vmem:[%s699 + $0x1] sm:$0xff]
        %v717 = vld [vmem:[%s699 + $0x9] sm:$0xff]
        %v718 = vld [vmem:[%s699 + $0x19] sm:$0xff]
        %v719 = vld [vmem:[%s699 + $0x21] sm:$0xff]
        %v720 = vld [vmem:[%s699 + $0x31] sm:$0xff]
        %v721 = vld [vmem:[%s699 + $0x39] sm:$0xff]
        %v722 = vld [vmem:[%s699 + $0x49] sm:$0xff]
        %v723 = vld [vmem:[%s699 + $0x51] sm:$0xff]
        %v724 = vld [vmem:[%s699 + $0x61] sm:$0xff]
        %v725 = vld [vmem:[%s699 + $0x69] sm:$0xff]
        %v726 = vld [vmem:[%s699 + $0x79] sm:$0xff]
        %v727 = vld [vmem:[%s699 + $0x81] sm:$0xff]
        %v728 = vld [vmem:[%s699 + $0x91] sm:$0xff]
        %v729 = vld [vmem:[%s699 + $0x99] sm:$0xff]
        %v730 = vld [vmem:[%s699 + $0xa9] sm:$0xff]
        %v731 = vld [vmem:[%s699 + $0xb1] sm:$0xff]
        %v732 = vld [vmem:[%s699 + $0x2] sm:$0xff]
        %v733 = vld [vmem:[%s699 + $0xa] sm:$0xff]
        %v734 = vld [vmem:[%s699 + $0x1a] sm:$0xff]
        %v735 = vld [vmem:[%s699 + $0x22] sm:$0xff]
        %v736 = vld [vmem:[%s699 + $0x32] sm:$0xff]
        %v737 = vld [vmem:[%s699 + $0x3a] sm:$0xff]
        %v738 = vld [vmem:[%s699 + $0x4a] sm:$0xff]
        %v739 = vld [vmem:[%s699 + $0x52] sm:$0xff]
        %v740 = vld [vmem:[%s699 + $0x62] sm:$0xff]
        %v741 = vld [vmem:[%s699 + $0x6a] sm:$0xff]
        %v742 = vld [vmem:[%s699 + $0x7a] sm:$0xff]
        %v743 = vld [vmem:[%s699 + $0x82] sm:$0xff]
        %v744 = vld [vmem:[%s699 + $0x92] sm:$0xff]
        %v745 = vld [vmem:[%s699 + $0x9a] sm:$0xff]
        %v746 = vld [vmem:[%s699 + $0xaa] sm:$0xff]
        %v747 = vld [vmem:[%s699 + $0xb2] sm:$0xff]
        %764 = vrot.lane.b32.xlu0 %v618, 8
        %v765 = vpop.permute.xlu0 %764
        %766 = vrot.lane.b32.xlu0 %v619, 8
        %v767 = vpop.permute.xlu0 %766
        %768 = vrot.lane.b32.xlu0 %v620, 8
        %v769 = vpop.permute.xlu0 %768
        %770 = vrot.lane.b32.xlu0 %v621, 8
        %v771 = vpop.permute.xlu0 %770
        %772 = vrot.lane.b32.xlu0 %v622, 8
        %v773 = vpop.permute.xlu0 %772
        %774 = vrot.lane.b32.xlu0 %v623, 8
        %v775 = vpop.permute.xlu0 %774
        %776 = vrot.lane.b32.xlu0 %v624, 8
        %v777 = vpop.permute.xlu0 %776
        %778 = vrot.lane.b32.xlu0 %v625, 8
        %v779 = vpop.permute.xlu0 %778
        %780 = vrot.lane.b32.xlu0 %v626, 8
        %v781 = vpop.permute.xlu0 %780
        %782 = vrot.lane.b32.xlu0 %v627, 8
        %v783 = vpop.permute.xlu0 %782
        %784 = vrot.lane.b32.xlu0 %v628, 8
        %v785 = vpop.permute.xlu0 %784
        %786 = vrot.lane.b32.xlu0 %v629, 8
        %v787 = vpop.permute.xlu0 %786
        %788 = vrot.lane.b32.xlu0 %v630, 8
        %v789 = vpop.permute.xlu0 %788
        %790 = vrot.lane.b32.xlu0 %v631, 8
        %v791 = vpop.permute.xlu0 %790
        %792 = vrot.lane.b32.xlu0 %v632, 8
        %v793 = vpop.permute.xlu0 %792
        %794 = vrot.lane.b32.xlu0 %v633, 8
        %v795 = vpop.permute.xlu0 %794
        %828 = vrot.lane.b32.xlu0 %v634, 16
        %v829 = vpop.permute.xlu0 %828
        %830 = vrot.lane.b32.xlu0 %v635, 16
        %v831 = vpop.permute.xlu0 %830
        %832 = vrot.lane.b32.xlu0 %v636, 16
        %v833 = vpop.permute.xlu0 %832
        %834 = vrot.lane.b32.xlu0 %v637, 16
        %v835 = vpop.permute.xlu0 %834
        %836 = vrot.lane.b32.xlu0 %v638, 16
        %v837 = vpop.permute.xlu0 %836
        %838 = vrot.lane.b32.xlu0 %v639, 16
        %v839 = vpop.permute.xlu0 %838
        %840 = vrot.lane.b32.xlu0 %v640, 16
        %v841 = vpop.permute.xlu0 %840
        %842 = vrot.lane.b32.xlu0 %v641, 16
        %v843 = vpop.permute.xlu0 %842
        %844 = vrot.lane.b32.xlu0 %v642, 16
        %v845 = vpop.permute.xlu0 %844
        %846 = vrot.lane.b32.xlu0 %v643, 16
        %v847 = vpop.permute.xlu0 %846
        %848 = vrot.lane.b32.xlu0 %v644, 16
        %v849 = vpop.permute.xlu0 %848
        %850 = vrot.lane.b32.xlu0 %v645, 16
        %v851 = vpop.permute.xlu0 %850
        %852 = vrot.lane.b32.xlu0 %v646, 16
        %v853 = vpop.permute.xlu0 %852
        %854 = vrot.lane.b32.xlu0 %v647, 16
        %v855 = vpop.permute.xlu0 %854
        %856 = vrot.lane.b32.xlu0 %v648, 16
        %v857 = vpop.permute.xlu0 %856
        %858 = vrot.lane.b32.xlu0 %v649, 16
        %v859 = vpop.permute.xlu0 %858
        %892 = vrot.lane.b32.xlu0 %v651, 24
        %v893 = vpop.permute.xlu0 %892
        %894 = vrot.lane.b32.xlu0 %v652, 24
        %v895 = vpop.permute.xlu0 %894
        %896 = vrot.lane.b32.xlu0 %v653, 24
        %v897 = vpop.permute.xlu0 %896
        %898 = vrot.lane.b32.xlu0 %v654, 24
        %v899 = vpop.permute.xlu0 %898
        %900 = vrot.lane.b32.xlu0 %v655, 24
        %v901 = vpop.permute.xlu0 %900
        %902 = vrot.lane.b32.xlu0 %v656, 24
        %v903 = vpop.permute.xlu0 %902
        %904 = vrot.lane.b32.xlu0 %v657, 24
        %v905 = vpop.permute.xlu0 %904
        %906 = vrot.lane.b32.xlu0 %v658, 24
        %v907 = vpop.permute.xlu0 %906
        %908 = vrot.lane.b32.xlu0 %v659, 24
        %v909 = vpop.permute.xlu0 %908
        %910 = vrot.lane.b32.xlu0 %v660, 24
        %v911 = vpop.permute.xlu0 %910
        %912 = vrot.lane.b32.xlu0 %v661, 24
        %v913 = vpop.permute.xlu0 %912
        %914 = vrot.lane.b32.xlu0 %v662, 24
        %v915 = vpop.permute.xlu0 %914
        %916 = vrot.lane.b32.xlu0 %v663, 24
        %v917 = vpop.permute.xlu0 %916
        %918 = vrot.lane.b32.xlu0 %v664, 24
        %v919 = vpop.permute.xlu0 %918
        %920 = vrot.lane.b32.xlu0 %v665, 24
        %v921 = vpop.permute.xlu0 %920
        %922 = vrot.lane.b32.xlu0 %v666, 24
        %v923 = vpop.permute.xlu0 %922
        %956 = vrot.lane.b32.xlu0 %v667, 32
        %v957 = vpop.permute.xlu0 %956
        %958 = vrot.lane.b32.xlu0 %v668, 32
        %v959 = vpop.permute.xlu0 %958
        %960 = vrot.lane.b32.xlu0 %v669, 32
        %v961 = vpop.permute.xlu0 %960
        %962 = vrot.lane.b32.xlu0 %v670, 32
        %v963 = vpop.permute.xlu0 %962
        %964 = vrot.lane.b32.xlu0 %v671, 32
        %v965 = vpop.permute.xlu0 %964
        %966 = vrot.lane.b32.xlu0 %v672, 32
        %v967 = vpop.permute.xlu0 %966
        %968 = vrot.lane.b32.xlu0 %v673, 32
        %v969 = vpop.permute.xlu0 %968
        %970 = vrot.lane.b32.xlu0 %v674, 32
        %v971 = vpop.permute.xlu0 %970
        %972 = vrot.lane.b32.xlu0 %v675, 32
        %v973 = vpop.permute.xlu0 %972
        %974 = vrot.lane.b32.xlu0 %v676, 32
        %v975 = vpop.permute.xlu0 %974
        %976 = vrot.lane.b32.xlu0 %v677, 32
        %v977 = vpop.permute.xlu0 %976
        %978 = vrot.lane.b32.xlu0 %v678, 32
        %v979 = vpop.permute.xlu0 %978
        %980 = vrot.lane.b32.xlu0 %v679, 32
        %v981 = vpop.permute.xlu0 %980
        %982 = vrot.lane.b32.xlu0 %v680, 32
        %v983 = vpop.permute.xlu0 %982
        %984 = vrot.lane.b32.xlu0 %v681, 32
        %v985 = vpop.permute.xlu0 %984
        %986 = vrot.lane.b32.xlu0 %v682, 32
        %v987 = vpop.permute.xlu0 %986
        %1020 = vrot.lane.b32.xlu0 %v683, 40
        %v1021 = vpop.permute.xlu0 %1020
        %1022 = vrot.lane.b32.xlu0 %v684, 40
        %v1023 = vpop.permute.xlu0 %1022
        %1024 = vrot.lane.b32.xlu0 %v685, 40
        %v1025 = vpop.permute.xlu0 %1024
        %1026 = vrot.lane.b32.xlu0 %v686, 40
        %v1027 = vpop.permute.xlu0 %1026
        %1028 = vrot.lane.b32.xlu0 %v687, 40
        %v1029 = vpop.permute.xlu0 %1028
        %1030 = vrot.lane.b32.xlu0 %v688, 40
        %v1031 = vpop.permute.xlu0 %1030
        %1032 = vrot.lane.b32.xlu0 %v689, 40
        %v1033 = vpop.permute.xlu0 %1032
        %1034 = vrot.lane.b32.xlu0 %v690, 40
        %v1035 = vpop.permute.xlu0 %1034
        %1036 = vrot.lane.b32.xlu0 %v691, 40
        %v1037 = vpop.permute.xlu0 %1036
        %1038 = vrot.lane.b32.xlu0 %v692, 40
        %v1039 = vpop.permute.xlu0 %1038
        %1040 = vrot.lane.b32.xlu0 %v693, 40
        %v1041 = vpop.permute.xlu0 %1040
        %1042 = vrot.lane.b32.xlu0 %v694, 40
        %v1043 = vpop.permute.xlu0 %1042
        %1044 = vrot.lane.b32.xlu0 %v695, 40
        %v1045 = vpop.permute.xlu0 %1044
        %1046 = vrot.lane.b32.xlu0 %v696, 40
        %v1047 = vpop.permute.xlu0 %1046
        %1048 = vrot.lane.b32.xlu0 %v697, 40
        %v1049 = vpop.permute.xlu0 %1048
        %1050 = vrot.lane.b32.xlu0 %v698, 40
        %v1051 = vpop.permute.xlu0 %1050
        %1084 = vrot.lane.b32.xlu0 %v700, 48
        %v1085 = vpop.permute.xlu0 %1084
        %1086 = vrot.lane.b32.xlu0 %v701, 48
        %v1087 = vpop.permute.xlu0 %1086
        %1088 = vrot.lane.b32.xlu0 %v702, 48
        %v1089 = vpop.permute.xlu0 %1088
        %1090 = vrot.lane.b32.xlu0 %v703, 48
        %v1091 = vpop.permute.xlu0 %1090
        %1092 = vrot.lane.b32.xlu0 %v704, 48
        %v1093 = vpop.permute.xlu0 %1092
        %1094 = vrot.lane.b32.xlu0 %v705, 48
        %v1095 = vpop.permute.xlu0 %1094
        %1096 = vrot.lane.b32.xlu0 %v706, 48
        %v1097 = vpop.permute.xlu0 %1096
        %1098 = vrot.lane.b32.xlu0 %v707, 48
        %v1099 = vpop.permute.xlu0 %1098
        %1100 = vrot.lane.b32.xlu0 %v708, 48
        %v1101 = vpop.permute.xlu0 %1100
        %1102 = vrot.lane.b32.xlu0 %v709, 48
        %v1103 = vpop.permute.xlu0 %1102
        %1104 = vrot.lane.b32.xlu0 %v710, 48
        %v1105 = vpop.permute.xlu0 %1104
        %1106 = vrot.lane.b32.xlu0 %v711, 48
        %v1107 = vpop.permute.xlu0 %1106
        %1108 = vrot.lane.b32.xlu0 %v712, 48
        %v1109 = vpop.permute.xlu0 %1108
        %1110 = vrot.lane.b32.xlu0 %v713, 48
        %v1111 = vpop.permute.xlu0 %1110
        %1112 = vrot.lane.b32.xlu0 %v714, 48
        %v1113 = vpop.permute.xlu0 %1112
        %1114 = vrot.lane.b32.xlu0 %v715, 48
        %v1115 = vpop.permute.xlu0 %1114
        %1148 = vrot.lane.b32.xlu0 %v716, 56
        %v1149 = vpop.permute.xlu0 %1148
        %1150 = vrot.lane.b32.xlu0 %v717, 56
        %v1151 = vpop.permute.xlu0 %1150
        %1152 = vrot.lane.b32.xlu0 %v718, 56
        %v1153 = vpop.permute.xlu0 %1152
        %1154 = vrot.lane.b32.xlu0 %v719, 56
        %v1155 = vpop.permute.xlu0 %1154
        %1156 = vrot.lane.b32.xlu0 %v720, 56
        %v1157 = vpop.permute.xlu0 %1156
        %1158 = vrot.lane.b32.xlu0 %v721, 56
        %v1159 = vpop.permute.xlu0 %1158
        %1160 = vrot.lane.b32.xlu0 %v722, 56
        %v1161 = vpop.permute.xlu0 %1160
        %1162 = vrot.lane.b32.xlu0 %v723, 56
        %v1163 = vpop.permute.xlu0 %1162
        %1164 = vrot.lane.b32.xlu0 %v724, 56
        %v1165 = vpop.permute.xlu0 %1164
        %1166 = vrot.lane.b32.xlu0 %v725, 56
        %v1167 = vpop.permute.xlu0 %1166
        %1168 = vrot.lane.b32.xlu0 %v726, 56
        %v1169 = vpop.permute.xlu0 %1168
        %1170 = vrot.lane.b32.xlu0 %v727, 56
        %v1171 = vpop.permute.xlu0 %1170
        %1172 = vrot.lane.b32.xlu0 %v728, 56
        %v1173 = vpop.permute.xlu0 %1172
        %1174 = vrot.lane.b32.xlu0 %v729, 56
        %v1175 = vpop.permute.xlu0 %1174
        %1176 = vrot.lane.b32.xlu0 %v730, 56
        %v1177 = vpop.permute.xlu0 %1176
        %1178 = vrot.lane.b32.xlu0 %v731, 56
        %v1179 = vpop.permute.xlu0 %1178
        %1212 = vrot.lane.b32.xlu0 %v732, 64
        %v1213 = vpop.permute.xlu0 %1212
        %1214 = vrot.lane.b32.xlu0 %v733, 64
        %v1215 = vpop.permute.xlu0 %1214
        %1216 = vrot.lane.b32.xlu0 %v734, 64
        %v1217 = vpop.permute.xlu0 %1216
        %1218 = vrot.lane.b32.xlu0 %v735, 64
        %v1219 = vpop.permute.xlu0 %1218
        %1220 = vrot.lane.b32.xlu0 %v736, 64
        %v1221 = vpop.permute.xlu0 %1220
        %1222 = vrot.lane.b32.xlu0 %v737, 64
        %v1223 = vpop.permute.xlu0 %1222
        %1224 = vrot.lane.b32.xlu0 %v738, 64
        %v1225 = vpop.permute.xlu0 %1224
        %1226 = vrot.lane.b32.xlu0 %v739, 64
        %v1227 = vpop.permute.xlu0 %1226
        %1228 = vrot.lane.b32.xlu0 %v740, 64
        %v1229 = vpop.permute.xlu0 %1228
        %1230 = vrot.lane.b32.xlu0 %v741, 64
        %v1231 = vpop.permute.xlu0 %1230
        %1232 = vrot.lane.b32.xlu0 %v742, 64
        %v1233 = vpop.permute.xlu0 %1232
        %1234 = vrot.lane.b32.xlu0 %v743, 64
        %v1235 = vpop.permute.xlu0 %1234
        %1236 = vrot.lane.b32.xlu0 %v744, 64
        %v1237 = vpop.permute.xlu0 %1236
        %1238 = vrot.lane.b32.xlu0 %v745, 64
        %v1239 = vpop.permute.xlu0 %1238
        %1240 = vrot.lane.b32.xlu0 %v746, 64
        %v1241 = vpop.permute.xlu0 %1240
        %1242 = vrot.lane.b32.xlu0 %v747, 64
        %v1243 = vpop.permute.xlu0 %1242
        %v1260 = vsel %vm543, %v602, %v765
        %v1261 = vsel %vm543, %v603, %v767
        %v1262 = vsel %vm543, %v604, %v769
        %v1263 = vsel %vm543, %v605, %v771
        %v1264 = vsel %vm543, %v606, %v773
        %v1265 = vsel %vm543, %v607, %v775
        %v1266 = vsel %vm543, %v608, %v777
        %v1267 = vsel %vm543, %v609, %v779
        %v1268 = vsel %vm543, %v610, %v781
        %v1269 = vsel %vm543, %v611, %v783
        %v1270 = vsel %vm543, %v612, %v785
        %v1271 = vsel %vm543, %v613, %v787
        %v1272 = vsel %vm543, %v614, %v789
        %v1273 = vsel %vm543, %v615, %v791
        %v1274 = vsel %vm543, %v616, %v793
        %v1275 = vsel %vm543, %v617, %v795
        %vm1276 = vcmask 130048
        %v1277 = vsel %vm1276, %v1260, %v829
        %v1278 = vsel %vm1276, %v1261, %v831
        %v1279 = vsel %vm1276, %v1262, %v833
        %v1280 = vsel %vm1276, %v1263, %v835
        %v1281 = vsel %vm1276, %v1264, %v837
        %v1282 = vsel %vm1276, %v1265, %v839
        %v1283 = vsel %vm1276, %v1266, %v841
        %v1284 = vsel %vm1276, %v1267, %v843
        %v1285 = vsel %vm1276, %v1268, %v845
        %v1286 = vsel %vm1276, %v1269, %v847
        %v1287 = vsel %vm1276, %v1270, %v849
        %v1288 = vsel %vm1276, %v1271, %v851
        %v1289 = vsel %vm1276, %v1272, %v853
        %v1290 = vsel %vm1276, %v1273, %v855
        %v1291 = vsel %vm1276, %v1274, %v857
        %v1292 = vsel %vm1276, %v1275, %v859
        %vm1293 = vcmask 195584
        %v1294 = vsel %vm1293, %v1277, %v893
        %v1295 = vsel %vm1293, %v1278, %v895
        %v1296 = vsel %vm1293, %v1279, %v897
        %v1297 = vsel %vm1293, %v1280, %v899
        %v1298 = vsel %vm1293, %v1281, %v901
        %v1299 = vsel %vm1293, %v1282, %v903
        %v1300 = vsel %vm1293, %v1283, %v905
        %v1301 = vsel %vm1293, %v1284, %v907
        %v1302 = vsel %vm1293, %v1285, %v909
        %v1303 = vsel %vm1293, %v1286, %v911
        %v1304 = vsel %vm1293, %v1287, %v913
        %v1305 = vsel %vm1293, %v1288, %v915
        %v1306 = vsel %vm1293, %v1289, %v917
        %v1307 = vsel %vm1293, %v1290, %v919
        %v1308 = vsel %vm1293, %v1291, %v921
        %v1309 = vsel %vm1293, %v1292, %v923
        %v1310 = vsel %vm379, %v1294, %v957
        %v1311 = vsel %vm379, %v1295, %v959
        %v1312 = vsel %vm379, %v1296, %v961
        %v1313 = vsel %vm379, %v1297, %v963
        %v1314 = vsel %vm379, %v1298, %v965
        %v1315 = vsel %vm379, %v1299, %v967
        %v1316 = vsel %vm379, %v1300, %v969
        %v1317 = vsel %vm379, %v1301, %v971
        %v1318 = vsel %vm379, %v1302, %v973
        %v1319 = vsel %vm379, %v1303, %v975
        %v1320 = vsel %vm379, %v1304, %v977
        %v1321 = vsel %vm379, %v1305, %v979
        %v1322 = vsel %vm379, %v1306, %v981
        %v1323 = vsel %vm379, %v1307, %v983
        %v1324 = vsel %vm379, %v1308, %v985
        %v1325 = vsel %vm379, %v1309, %v987
        %vm1326 = vcmask 326656
        %v1327 = vsel %vm1326, %v1310, %v1021
        %v1328 = vsel %vm1326, %v1311, %v1023
        %v1329 = vsel %vm1326, %v1312, %v1025
        %v1330 = vsel %vm1326, %v1313, %v1027
        %v1331 = vsel %vm1326, %v1314, %v1029
        %v1332 = vsel %vm1326, %v1315, %v1031
        %v1333 = vsel %vm1326, %v1316, %v1033
        %v1334 = vsel %vm1326, %v1317, %v1035
        %v1335 = vsel %vm1326, %v1318, %v1037
        %v1336 = vsel %vm1326, %v1319, %v1039
        %v1337 = vsel %vm1326, %v1320, %v1041
        %v1338 = vsel %vm1326, %v1321, %v1043
        %v1339 = vsel %vm1326, %v1322, %v1045
        %v1340 = vsel %vm1326, %v1323, %v1047
        %v1341 = vsel %vm1326, %v1324, %v1049
        %v1342 = vsel %vm1326, %v1325, %v1051
        %vm1343 = vcmask 392192
        %v1344 = vsel %vm1343, %v1327, %v1085
        %v1345 = vsel %vm1343, %v1328, %v1087
        %v1346 = vsel %vm1343, %v1329, %v1089
        %v1347 = vsel %vm1343, %v1330, %v1091
        %v1348 = vsel %vm1343, %v1331, %v1093
        %v1349 = vsel %vm1343, %v1332, %v1095
        %v1350 = vsel %vm1343, %v1333, %v1097
        %v1351 = vsel %vm1343, %v1334, %v1099
        %v1352 = vsel %vm1343, %v1335, %v1101
        %v1353 = vsel %vm1343, %v1336, %v1103
        %v1354 = vsel %vm1343, %v1337, %v1105
        %v1355 = vsel %vm1343, %v1338, %v1107
        %v1356 = vsel %vm1343, %v1339, %v1109
        %v1357 = vsel %vm1343, %v1340, %v1111
        %v1358 = vsel %vm1343, %v1341, %v1113
        %v1359 = vsel %vm1343, %v1342, %v1115
        %vm1360 = vcmask 457728
        %v1361 = vsel %vm1360, %v1344, %v1149
        %v1362 = vsel %vm1360, %v1345, %v1151
        %v1363 = vsel %vm1360, %v1346, %v1153
        %v1364 = vsel %vm1360, %v1347, %v1155
        %v1365 = vsel %vm1360, %v1348, %v1157
        %v1366 = vsel %vm1360, %v1349, %v1159
        %v1367 = vsel %vm1360, %v1350, %v1161
        %v1368 = vsel %vm1360, %v1351, %v1163
        %v1369 = vsel %vm1360, %v1352, %v1165
        %v1370 = vsel %vm1360, %v1353, %v1167
        %v1371 = vsel %vm1360, %v1354, %v1169
        %v1372 = vsel %vm1360, %v1355, %v1171
        %v1373 = vsel %vm1360, %v1356, %v1173
        %v1374 = vsel %vm1360, %v1357, %v1175
        %v1375 = vsel %vm1360, %v1358, %v1177
        %v1376 = vsel %vm1360, %v1359, %v1179
        %vm1377 = vcmask 523264
        %v1378 = vsel %vm1377, %v1361, %v1213
        %v1379 = vsel %vm1377, %v1362, %v1215
        %v1380 = vsel %vm1377, %v1363, %v1217
        %v1381 = vsel %vm1377, %v1364, %v1219
        %v1382 = vsel %vm1377, %v1365, %v1221
        %v1383 = vsel %vm1377, %v1366, %v1223
        %v1384 = vsel %vm1377, %v1367, %v1225
        %v1385 = vsel %vm1377, %v1368, %v1227
        %v1386 = vsel %vm1377, %v1369, %v1229
        %v1387 = vsel %vm1377, %v1370, %v1231
        %v1388 = vsel %vm1377, %v1371, %v1233
        %v1389 = vsel %vm1377, %v1372, %v1235
        %v1390 = vsel %vm1377, %v1373, %v1237
        %v1391 = vsel %vm1377, %v1374, %v1239
        %v1392 = vsel %vm1377, %v1375, %v1241
        %v1393 = vsel %vm1377, %v1376, %v1243
        %v1394 = vpack.c.bf16 %v1379, %v1378
        %v1395 = vpack.c.bf16 %v1381, %v1380
        %v1396 = vpack.c.bf16 %v1383, %v1382
        %v1397 = vpack.c.bf16 %v1385, %v1384
        %v1398 = vpack.c.bf16 %v1387, %v1386
        %v1399 = vpack.c.bf16 %v1389, %v1388
        %v1400 = vpack.c.bf16 %v1391, %v1390
        %v1401 = vpack.c.bf16 %v1393, %v1392
        %v1402 = vld [vmem:[%s2] sm:$0xf]
        %v1403 = vld [vmem:[%s2 + $0x4] sm:$0xf]
        %v1404 = vld [vmem:[%s2 + $0x8] sm:$0xf]
        %v1405 = vld [vmem:[%s2 + $0xc] sm:$0xf]
        %v1406 = vld [vmem:[%s2 + $0x10] sm:$0xf]
        %v1407 = vld [vmem:[%s2 + $0x14] sm:$0xf]
        %v1408 = vld [vmem:[%s2 + $0x18] sm:$0xf]
        %v1409 = vld [vmem:[%s2 + $0x1c] sm:$0xf]
        %v1410 = vld [vmem:[%s2 + $0x20] sm:$0xf]
        %v1411 = vld [vmem:[%s5] sm:$0x1]
        %v1413 = vlaneseq
        %v1414 = vshrl.u32 %v1413, 7
        %v1415 = vsub.s32 0, %v1414
        %v1416 = vrot.slane %v1411, %v1415
        %v1427 = vunpack.c.l.b16 %v1402
        %v1428 = vunpack.c.l.b16 %v1403
        %v1429 = vunpack.c.l.b16 %v1404
        %v1430 = vunpack.c.l.b16 %v1405
        %v1431 = vunpack.c.l.b16 %v1406
        %v1432 = vunpack.c.l.b16 %v1407
        %v1433 = vunpack.c.l.b16 %v1408
        %v1434 = vunpack.c.l.b16 %v1409
        %v1435 = vunpack.c.l.b16 %v1410
        %v1436 = vpack.c.b16 %v1428, %v1427
        %v1437 = vpack.c.b16 %v1430, %v1429
        %v1438 = vpack.c.b16 %v1432, %v1431
        %v1439 = vpack.c.b16 %v1434, %v1433
        %v1440 = vpack.c.b16 %v1435, %v1435
        %vm1445 = vcmask 588800
        %v1447 = vsel %vm1445, %v1394, 0
        %v1450 = vsel %vm1445, %v1395, 0
        %v1453 = vsel %vm1445, %v1396, 0
        %v1456 = vsel %vm1445, %v1397, 0
        %v1459 = vsel %vm1445, %v1398, 0
        %v1462 = vsel %vm1445, %v1399, 0
        %v1465 = vsel %vm1445, %v1400, 0
        %v1468 = vsel %vm1445, %v1401, 0
        %vm1470 = vcmask 1043456
        %v1472 = vsel %vm1470, %v1440, 0
        %1474 = vmatprep.subr.bf16.mxu0 0
        %1475 = vmatpush1.bf16.msra.mxu0 0
        %1476 = vmatprep.subr.bf16.mxu0 0
        %1477 = vmatpush1.bf16.msra.mxu0 0
        %1478 = vmatprep.subr.bf16.mxu0 0
        %1479 = vmatpush1.bf16.msra.mxu0 0
        %1480 = vmatprep.subr.bf16.mxu0 0
        %1481 = vmatpush1.bf16.msra.mxu0 %v1472
        %1482 = vmatprep.subr.bf16.mxu0 0
        %1483 = vmatpush1.bf16.msra.mxu0 %v1439
        %1484 = vmatprep.subr.bf16.mxu0 0
        %1485 = vmatpush1.bf16.msra.mxu0 %v1438
        %1486 = vmatprep.subr.bf16.mxu0 0
        %1487 = vmatpush1.bf16.msra.mxu0 %v1437
        %1488 = vmatprep.subr.bf16.mxu0 0
        %1489 = vmatpush1.bf16.msra.mxu0 %v1436
        %1490 = vmatprep.subr.bf16.mxu0 0
        %1491 = vmatpush2.bf16.msra.mxu0 0
        %1492 = vmatprep.subr.bf16.mxu0 0
        %1493 = vmatpush2.bf16.msra.mxu0 0
        %1494 = vmatprep.subr.bf16.mxu0 0
        %1495 = vmatpush2.bf16.msra.mxu0 0
        %1496 = vmatprep.subr.bf16.mxu0 0
        %1497 = vmatpush2.bf16.msra.mxu0 0
        %1498 = vmatprep.subr.bf16.mxu0 0
        %1499 = vmatpush2.bf16.msra.mxu0 0
        %1500 = vmatprep.subr.bf16.mxu0 0
        %1501 = vmatpush2.bf16.msra.mxu0 0
        %1502 = vmatprep.subr.bf16.mxu0 0
        %1503 = vmatpush2.bf16.msra.mxu0 0
        %1504 = vmatprep.subr.bf16.mxu0 0
        %1505 = vmatpush2.bf16.msra.mxu0 0
        %1506 = vmatprep.mubr.bf16.mxu0 0
        %1507 = vmatmul.mubr.bf16.gmra.mxu0 %v1447
        %v1508 = vpop.f32.mrf.mxu0
        %v1509 = vadd.f32 %v1416, %v1508
        %v1510 = vpop.f32.mrf.mxu0
        %v1511 = vpop.f32.mrf.mxu0
        %v1512 = vadd.f32 %v1416, %v1511
        %v1513 = vpop.f32.mrf.mxu0
        %1514 = vmatprep.mubr.bf16.mxu0 0
        %1515 = vmatmul.mubr.bf16.gmra.mxu0 %v1450
        %v1516 = vpop.f32.mrf.mxu0
        %v1517 = vadd.f32 %v1416, %v1516
        %v1518 = vpop.f32.mrf.mxu0
        %v1519 = vpop.f32.mrf.mxu0
        %v1520 = vadd.f32 %v1416, %v1519
        %v1521 = vpop.f32.mrf.mxu0
        %1522 = vmatprep.mubr.bf16.mxu0 0
        %1523 = vmatmul.mubr.bf16.gmra.mxu0 %v1453
        %v1524 = vpop.f32.mrf.mxu0
        %v1525 = vadd.f32 %v1416, %v1524
        %v1526 = vpop.f32.mrf.mxu0
        %v1527 = vpop.f32.mrf.mxu0
        %v1528 = vadd.f32 %v1416, %v1527
        %v1529 = vpop.f32.mrf.mxu0
        %1530 = vmatprep.mubr.bf16.mxu0 0
        %1531 = vmatmul.mubr.bf16.gmra.mxu0 %v1456
        %v1532 = vpop.f32.mrf.mxu0
        %v1533 = vadd.f32 %v1416, %v1532
        %v1534 = vpop.f32.mrf.mxu0
        %v1535 = vpop.f32.mrf.mxu0
        %v1536 = vadd.f32 %v1416, %v1535
        %v1537 = vpop.f32.mrf.mxu0
        %1538 = vmatprep.mubr.bf16.mxu0 0
        %1539 = vmatmul.mubr.bf16.gmra.mxu0 %v1459
        %v1540 = vpop.f32.mrf.mxu0
        %v1541 = vadd.f32 %v1416, %v1540
        %v1542 = vpop.f32.mrf.mxu0
        %v1543 = vpop.f32.mrf.mxu0
        %v1544 = vadd.f32 %v1416, %v1543
        %v1545 = vpop.f32.mrf.mxu0
        %1546 = vmatprep.mubr.bf16.mxu0 0
        %1547 = vmatmul.mubr.bf16.gmra.mxu0 %v1462
        %v1548 = vpop.f32.mrf.mxu0
        %v1549 = vadd.f32 %v1416, %v1548
        %v1550 = vpop.f32.mrf.mxu0
        %v1551 = vpop.f32.mrf.mxu0
        %v1552 = vadd.f32 %v1416, %v1551
        %v1553 = vpop.f32.mrf.mxu0
        %1554 = vmatprep.mubr.bf16.mxu0 0
        %1555 = vmatmul.mubr.bf16.gmra.mxu0 %v1465
        %v1556 = vpop.f32.mrf.mxu0
        %v1557 = vadd.f32 %v1416, %v1556
        %v1558 = vpop.f32.mrf.mxu0
        %v1559 = vpop.f32.mrf.mxu0
        %v1560 = vadd.f32 %v1416, %v1559
        %v1561 = vpop.f32.mrf.mxu0
        %1562 = vmatprep.mubr.bf16.mxu0 0
        %1563 = vmatmul.mubr.bf16.gmra.mxu0 %v1468
        %v1564 = vpop.f32.mrf.mxu0
        %v1565 = vadd.f32 %v1416, %v1564
        %v1566 = vpop.f32.mrf.mxu0
        %v1567 = vpop.f32.mrf.mxu0
        %v1568 = vadd.f32 %v1416, %v1567
        %v1569 = vpop.f32.mrf.mxu0
        %1570 = vdwg.mxu0
        %v1571 = vmax.f32 %v1509, 0.0
        %v1572 = vmax.f32 %v1512, 0.0
        %v1573 = vmax.f32 %v1517, 0.0
        %v1574 = vmax.f32 %v1520, 0.0
        %v1575 = vmax.f32 %v1525, 0.0
        %v1576 = vmax.f32 %v1528, 0.0
        %v1577 = vmax.f32 %v1533, 0.0
        %v1578 = vmax.f32 %v1536, 0.0
        %v1579 = vmax.f32 %v1541, 0.0
        %v1580 = vmax.f32 %v1544, 0.0
        %v1581 = vmax.f32 %v1549, 0.0
        %v1582 = vmax.f32 %v1552, 0.0
        %v1583 = vmax.f32 %v1557, 0.0
        %v1584 = vmax.f32 %v1560, 0.0
        %v1585 = vmax.f32 %v1565, 0.0
        %v1586 = vmax.f32 %v1568, 0.0
        %v1587 = vpack.c.bf16 %v1572, %v1571
        %v1588 = vpack.c.bf16 %v1574, %v1573
        %v1589 = vpack.c.bf16 %v1576, %v1575
        %v1590 = vpack.c.bf16 %v1578, %v1577
        %v1591 = vpack.c.bf16 %v1580, %v1579
        %v1592 = vpack.c.bf16 %v1582, %v1581
        %v1593 = vpack.c.bf16 %v1584, %v1583
        %v1594 = vpack.c.bf16 %v1586, %v1585
        %v1595 = vld [vmem:[%s3] sm:$0xf]
        %v1596 = vld [vmem:[%s6] sm:$0x1]
        %v1598 = vlaneseq
        %v1599 = vshrl.u32 %v1598, 7
        %v1600 = vsub.s32 0, %v1599
        %v1601 = vrot.slane %v1596, %v1600
        %v1604 = vsel %vm543, %v1587, 0
        %v1607 = vsel %vm543, %v1588, 0
        %v1610 = vsel %vm543, %v1589, 0
        %v1613 = vsel %vm543, %v1590, 0
        %v1616 = vsel %vm543, %v1591, 0
        %v1619 = vsel %vm543, %v1592, 0
        %v1622 = vsel %vm543, %v1593, 0
        %v1625 = vsel %vm543, %v1594, 0
        %v1628 = vsel %vm1470, %v1595, 0
        %1630 = vmatprep.subr.bf16.mxu0 0
        %1631 = vmatpush1.bf16.msra.mxu0 0
        %1632 = vmatprep.subr.bf16.mxu0 0
        %1633 = vmatpush1.bf16.msra.mxu0 0
        %1634 = vmatprep.subr.bf16.mxu0 0
        %1635 = vmatpush1.bf16.msra.mxu0 0
        %1636 = vmatprep.subr.bf16.mxu0 0
        %1637 = vmatpush1.bf16.msra.mxu0 0
        %1638 = vmatprep.subr.bf16.mxu0 0
        %1639 = vmatpush1.bf16.msra.mxu0 0
        %1640 = vmatprep.subr.bf16.mxu0 0
        %1641 = vmatpush1.bf16.msra.mxu0 0
        %1642 = vmatprep.subr.bf16.mxu0 0
        %1643 = vmatpush1.bf16.msra.mxu0 0
        %1644 = vmatprep.subr.bf16.mxu0 0
        %1645 = vmatpush1.bf16.msra.mxu0 %v1628
        %1646 = vmatprep.subr.bf16.mxu0 0
        %1647 = vmatpush2.bf16.msra.mxu0 0
        %1648 = vmatprep.subr.bf16.mxu0 0
        %1649 = vmatpush2.bf16.msra.mxu0 0
        %1650 = vmatprep.subr.bf16.mxu0 0
        %1651 = vmatpush2.bf16.msra.mxu0 0
        %1652 = vmatprep.subr.bf16.mxu0 0
        %1653 = vmatpush2.bf16.msra.mxu0 0
        %1654 = vmatprep.subr.bf16.mxu0 0
        %1655 = vmatpush2.bf16.msra.mxu0 0
        %1656 = vmatprep.subr.bf16.mxu0 0
        %1657 = vmatpush2.bf16.msra.mxu0 0
        %1658 = vmatprep.subr.bf16.mxu0 0
        %1659 = vmatpush2.bf16.msra.mxu0 0
        %1660 = vmatprep.subr.bf16.mxu0 0
        %1661 = vmatpush2.bf16.msra.mxu0 0
        %1662 = vmatprep.mubr.bf16.mxu0 0
        %1663 = vmatmul.mubr.bf16.gmra.mxu0 %v1604
        %v1664 = vpop.f32.mrf.mxu0
        %v1665 = vadd.f32 %v1601, %v1664
        %v1666 = vpop.f32.mrf.mxu0
        %v1667 = vpop.f32.mrf.mxu0
        %v1668 = vadd.f32 %v1601, %v1667
        %v1669 = vpop.f32.mrf.mxu0
        %1670 = vmatprep.mubr.bf16.mxu0 0
        %1671 = vmatmul.mubr.bf16.gmra.mxu0 %v1607
        %v1672 = vpop.f32.mrf.mxu0
        %v1673 = vadd.f32 %v1601, %v1672
        %v1674 = vpop.f32.mrf.mxu0
        %v1675 = vpop.f32.mrf.mxu0
        %v1676 = vadd.f32 %v1601, %v1675
        %v1677 = vpop.f32.mrf.mxu0
        %1678 = vmatprep.mubr.bf16.mxu0 0
        %1679 = vmatmul.mubr.bf16.gmra.mxu0 %v1610
        %v1680 = vpop.f32.mrf.mxu0
        %v1681 = vadd.f32 %v1601, %v1680
        %v1682 = vpop.f32.mrf.mxu0
        %v1683 = vpop.f32.mrf.mxu0
        %v1684 = vadd.f32 %v1601, %v1683
        %v1685 = vpop.f32.mrf.mxu0
        %1686 = vmatprep.mubr.bf16.mxu0 0
        %1687 = vmatmul.mubr.bf16.gmra.mxu0 %v1613
        %v1688 = vpop.f32.mrf.mxu0
        %v1689 = vadd.f32 %v1601, %v1688
        %v1690 = vpop.f32.mrf.mxu0
        %v1691 = vpop.f32.mrf.mxu0
        %v1692 = vadd.f32 %v1601, %v1691
        %v1693 = vpop.f32.mrf.mxu0
        %1694 = vmatprep.mubr.bf16.mxu0 0
        %1695 = vmatmul.mubr.bf16.gmra.mxu0 %v1616
        %v1696 = vpop.f32.mrf.mxu0
        %v1697 = vadd.f32 %v1601, %v1696
        %v1698 = vpop.f32.mrf.mxu0
        %v1699 = vpop.f32.mrf.mxu0
        %v1700 = vadd.f32 %v1601, %v1699
        %v1701 = vpop.f32.mrf.mxu0
        %1702 = vmatprep.mubr.bf16.mxu0 0
        %1703 = vmatmul.mubr.bf16.gmra.mxu0 %v1619
        %v1704 = vpop.f32.mrf.mxu0
        %v1705 = vadd.f32 %v1601, %v1704
        %v1706 = vpop.f32.mrf.mxu0
        %v1707 = vpop.f32.mrf.mxu0
        %v1708 = vadd.f32 %v1601, %v1707
        %v1709 = vpop.f32.mrf.mxu0
        %1710 = vmatprep.mubr.bf16.mxu0 0
        %1711 = vmatmul.mubr.bf16.gmra.mxu0 %v1622
        %v1712 = vpop.f32.mrf.mxu0
        %v1713 = vadd.f32 %v1601, %v1712
        %v1714 = vpop.f32.mrf.mxu0
        %v1715 = vpop.f32.mrf.mxu0
        %v1716 = vadd.f32 %v1601, %v1715
        %v1717 = vpop.f32.mrf.mxu0
        %1718 = vmatprep.mubr.bf16.mxu0 0
        %1719 = vmatmul.mubr.bf16.gmra.mxu0 %v1625
        %v1720 = vpop.f32.mrf.mxu0
        %v1721 = vadd.f32 %v1601, %v1720
        %v1722 = vpop.f32.mrf.mxu0
        %v1723 = vpop.f32.mrf.mxu0
        %v1724 = vadd.f32 %v1601, %v1723
        %v1725 = vpop.f32.mrf.mxu0
        %1726 = vdwg.mxu0
        %v1727 = vadd.f32 %v1665, %v316
        %v1728 = vadd.f32 %v1668, %v317
        %v1729 = vadd.f32 %v1673, %v318
        %v1730 = vadd.f32 %v1676, %v319
        %v1731 = vadd.f32 %v1681, %v320
        %v1732 = vadd.f32 %v1684, %v321
        %v1733 = vadd.f32 %v1689, %v322
        %v1734 = vadd.f32 %v1692, %v323
        %v1735 = vadd.f32 %v1697, %v324
        %v1736 = vadd.f32 %v1700, %v325
        %v1737 = vadd.f32 %v1705, %v326
        %v1738 = vadd.f32 %v1708, %v327
        %v1739 = vadd.f32 %v1713, %v328
        %v1740 = vadd.f32 %v1716, %v329
        %v1741 = vadd.f32 %v1721, %v330
        %v1742 = vadd.f32 %v1724, %v331
        %v1743 = vmax.f32 %v1727, 0.0
        %v1744 = vmax.f32 %v1728, 0.0
        %v1745 = vmax.f32 %v1729, 0.0
        %v1746 = vmax.f32 %v1730, 0.0
        %v1747 = vmax.f32 %v1731, 0.0
        %v1748 = vmax.f32 %v1732, 0.0
        %v1749 = vmax.f32 %v1733, 0.0
        %v1750 = vmax.f32 %v1734, 0.0
        %v1751 = vmax.f32 %v1735, 0.0
        %v1752 = vmax.f32 %v1736, 0.0
        %v1753 = vmax.f32 %v1737, 0.0
        %v1754 = vmax.f32 %v1738, 0.0
        %v1755 = vmax.f32 %v1739, 0.0
        %v1756 = vmax.f32 %v1740, 0.0
        %v1757 = vmax.f32 %v1741, 0.0
        %v1758 = vmax.f32 %v1742, 0.0
        %1759 = vst.msk [vmem:[%s310] sm:$0xff] %vm379, %v1743
        %1760 = vst.msk [vmem:[%s310 + $0x8] sm:$0xff] %vm379, %v1744
        %1761 = vst.msk [vmem:[%s310 + $0x10] sm:$0xff] %vm379, %v1745
        %1762 = vst.msk [vmem:[%s310 + $0x18] sm:$0xff] %vm379, %v1746
        %1763 = vst.msk [vmem:[%s310 + $0x20] sm:$0xff] %vm379, %v1747
        %1764 = vst.msk [vmem:[%s310 + $0x28] sm:$0xff] %vm379, %v1748
        %1765 = vst.msk [vmem:[%s310 + $0x30] sm:$0xff] %vm379, %v1749
        %1766 = vst.msk [vmem:[%s310 + $0x38] sm:$0xff] %vm379, %v1750
        %1767 = vst.msk [vmem:[%s310 + $0x40] sm:$0xff] %vm379, %v1751
        %1768 = vst.msk [vmem:[%s310 + $0x48] sm:$0xff] %vm379, %v1752
        %1769 = vst.msk [vmem:[%s310 + $0x50] sm:$0xff] %vm379, %v1753
        %1770 = vst.msk [vmem:[%s310 + $0x58] sm:$0xff] %vm379, %v1754
        %1771 = vst.msk [vmem:[%s310 + $0x60] sm:$0xff] %vm379, %v1755
        %1772 = vst.msk [vmem:[%s310 + $0x68] sm:$0xff] %vm379, %v1756
        %1773 = vst.msk [vmem:[%s310 + $0x70] sm:$0xff] %vm379, %v1757
        %1774 = vst.msk [vmem:[%s310 + $0x78] sm:$0xff] %vm379, %v1758
        %s1775 = sand.u32 %s198, 1
        %s1776 = scalar_lea.sflag [#allocation5], %s1775
        %s1777 = sand.u32 %s198, 1
        %s1778 = smul.addr %s1777, 128
        %s1779 = scalar_lea.vmem [#allocation6], %s1778
        // Predicated region
        $region61: #{tpu_custom_call.1} parent=47 // pred_check
          %p1780 = pneg %p208
        $region62: #{tpu_custom_call.1} parent=47 // pred_check_branch
          %1782 = sbr.rel (%p1780) target = $region64
        $region63: #{tpu_custom_call.1} parent=47 // pred_region
          %s1783 = smul.u32 8, %s29
          %s1785 = ssub.s32 2048, 2048
          %1786 = vsyncadd %s1776, %s1785
          %s1787 = smul.addr %s1783, 2
          %s1788 = smul.addr %s28, 32
          %s1789 = sadd.s32 %s1787, %s1788
          %s1790 = smul.addr %s1789, 128
          %s1791 = scalar_lea.hbm %s7, %s1790
          %s1792 = sshll.u32 %s1779, 4
          %s1793 = int_to_ptr.vmem [resolvable:$true] %s1792
          %1798 = dma.vmem_to_hbm [thread:$0]  %s1793, 2048, %s1791, %s1776, 128, 128, 8
        $region64: #{tpu_custom_call.1} parent=47 // pred_fallthru
          _
      $region48: #{tpu_custom_call.1} parent=5 // pred_fallthru
        _
      %p1799 = scmp.le.s32.totalorder 2, %s19
      // Predicated region
      $region65: #{tpu_custom_call.1} parent=5 // pred_check
        %p1800 = pneg %p1799
      $region66: #{tpu_custom_call.1} parent=5 // pred_check_branch
        %1802 = sbr.rel (%p1800) target = $region68
      $region67: #{tpu_custom_call.1} parent=5 // pred_region
        %s1803 = ssub.s32 %s19, 2
        // Predicated region
        $region69: #{tpu_custom_call.1} parent=67 // pred_check
          %p1804 = pneg %p214
        $region70: #{tpu_custom_call.1} parent=67 // pred_check_branch
          %1806 = sbr.rel (%p1804) target = $region72
        $region71: #{tpu_custom_call.1} parent=67 // pred_region
          %s1807 = sand.u32 %s199, 1
          %s1808 = scalar_lea.sflag [#allocation5], %s1807
          %s1809 = sand.u32 %s199, 1
          %s1810 = smul.addr %s1809, 128
          %s1811 = scalar_lea.vmem [#allocation6], %s1810
          %1812 = dma.done %s1808, 2048
        $region72: #{tpu_custom_call.1} parent=67 // pred_fallthru
          _
      $region68: #{tpu_custom_call.1} parent=5 // pred_fallthru
        _
    $region6: #{tpu_custom_call.1} parent=1 // loop_footer
      %s23 = sadd.s32 1, %s19
    $region7: #{tpu_custom_call.1} parent=1 // loop_footer_branch
      %18 = sbr.rel target = $region3
    $region8: #{tpu_custom_call.1} parent=1 // loop_exit
      _
    %1813 = vsyncpa [#allocation4], 1
    %s1814 = scalar_lea.sflag [#allocation4], 1
    %1815 = vsyncpa %s1814, 1
    %1816 = vsyncpa [#allocation5], 1
    %s1817 = scalar_lea.sflag [#allocation5], 1
    %1818 = vsyncpa %s1817, 1

</llo_original>
